<compile_context>
chip_gen: v6e
topology: v6e:2x2x1
jax: 0.10.0
libtpu: 0.0.40
codegen_flags: <defaults>
</compile_context>

<pallas_src>
import functools
import math

import jax
import jax.numpy as jnp
from jax.experimental import pallas as pl
from jax.experimental.pallas import tpu as pltpu

EPS = 1e-5


# --------------------------------------------------------------------------
# Pallas kernel: (ComplexConv1d -> ComplexBN1d -> ComplexReLU) * 2, one VMEM block
# --------------------------------------------------------------------------
def _double_conv_kernel(xr_ref, xi_ref, w1_ref, bn1_ref, w2_ref, bn2_ref,
                        out_r_ref, out_i_ref, *, n_batch, seg_len, k_taps):
    nl = n_batch * seg_len
    pad = k_taps // 2
    inv_nl = 1.0 / float(nl)

    # hoisted: within-segment position + 0/1 boundary masks, shared by both convs
    l_idx = jax.lax.broadcasted_iota(jnp.int32, (1, nl), 1) % seg_len
    masks = {
        s: jnp.logical_and(l_idx + s >= 0, l_idx + s < seg_len).astype(jnp.float32)
        for s in range(-pad, pad + 1) if s != 0
    }
    ones_col = jnp.ones((nl, 1), jnp.float32)

    def block(base, w_ref, bn_ref):
        """conv (no bias) -> BN -> CReLU on a stacked slab base=[real; imag] (2*Cin, NL)."""
        # --- im2col on the contraction axis: K rolled+masked copies of the input slab
        cols = []
        for t in range(k_taps):
            s = t - pad                               # out[l] uses in[l + s]
            if s == 0:
                cols.append(base)
            else:
                cols.append(pltpu.roll(base, shift=(-s) % nl, axis=1) * masks[s])
        x_col = jnp.concatenate(cols, axis=0)         # (2*Cin*K, NL)

        # --- one block-complex matmul per conv (real/imag recombine folded into weights)
        y = jnp.dot(w_ref[...], x_col, preferred_element_type=jnp.float32)  # (2*Cout, NL)
        c = y.shape[0] // 2
        yr, yi = y[:c], y[c:]

        # --- BN batch stats (training mode): one MXU reduction vs a ones column
        stats_in = jnp.concatenate([y, y * y, yr * yi], axis=0)             # (5*Cout, NL)
        stats = jnp.dot(stats_in, ones_col,
                        preferred_element_type=jnp.float32) * inv_nl        # (5*Cout, 1)
        mr, mi = stats[:c], stats[c:2 * c]
        crr = stats[2 * c:3 * c] - mr * mr + EPS
        cii = stats[3 * c:4 * c] - mi * mi + EPS
        cri = stats[4 * c:5 * c] - mr * mi

        # inverse matrix square root of [[crr, cri], [cri, cii]]  (exact; tiny operand)
        det = crr * cii - cri * cri
        s_ = jnp.sqrt(det)
        inv_st = jax.lax.rsqrt(det) * jax.lax.rsqrt(crr + cii + 2.0 * s_)
        r_rr = (cii + s_) * inv_st
        r_ii = (crr + s_) * inv_st
        r_ri = -cri * inv_st

        # centering + whitening + affine collapsed into one per-channel 2x2 affine
        g_rr, g_ii, g_ri = bn_ref[0], bn_ref[1], bn_ref[2]
        beta_r, beta_i = bn_ref[3], bn_ref[4]
        a_rr = g_rr * r_rr + g_ri * r_ri
        a_ri = g_rr * r_ri + g_ri * r_ii
        a_ir = g_ri * r_rr + g_ii * r_ri
        a_ii = g_ri * r_ri + g_ii * r_ii
        c_r = beta_r - (a_rr * mr + a_ri * mi)
        c_i = beta_i - (a_ir * mr + a_ii * mi)

        zr = jnp.maximum(a_rr * yr + a_ri * yi + c_r, 0.0)    # ComplexReLU
        zi = jnp.maximum(a_ir * yr + a_ii * yi + c_i, 0.0)
        return zr, zi

    # assemble the lane-dense (2*Cin, N*L) slab in VMEM (inputs stay in NCL in HBM)
    base_r = jnp.concatenate([xr_ref[n] for n in range(n_batch)], axis=-1)
    base_i = jnp.concatenate([xi_ref[n] for n in range(n_batch)], axis=-1)
    yr, yi = block(jnp.concatenate([base_r, base_i], axis=0), w1_ref, bn1_ref)
    zr, zi = block(jnp.concatenate([yr, yi], axis=0), w2_ref, bn2_ref)

    # write back in PyTorch NCL layout; one full-lane (Cout, L) store per batch element
    for n in range(n_batch):
        out_r_ref[n] = zr[:, n * seg_len:(n + 1) * seg_len]
        out_i_ref[n] = zi[:, n * seg_len:(n + 1) * seg_len]


# --------------------------------------------------------------------------
# Wrapper: weight repack + single pallas_call (whole problem resident in VMEM)
# --------------------------------------------------------------------------
def _pack_block_weight(w):
    """(2, Cout, Cin, K) [0=real,1=imag] -> (2*Cout, 2*Cin*K) block-complex im2col weight."""
    wr, wi = w[0], w[1]
    k = w.shape[-1]
    blocks = []
    for t in range(k):
        top = jnp.concatenate([wr[:, :, t], -wi[:, :, t]], axis=1)   # (Cout, 2*Cin)
        bot = jnp.concatenate([wi[:, :, t],  wr[:, :, t]], axis=1)
        blocks.append(jnp.concatenate([top, bot], axis=0))           # (2*Cout, 2*Cin)
    return jnp.concatenate(blocks, axis=1)                           # (2*Cout, 2*Cin*K)


def _vmem_limit_bytes(n, c_in, c_mid, c_out, length, k):
    nl = n * length
    # rough count of live f32 rows x NL lanes in the fused single-block kernel
    rows = 2 * c_in * (k + 2) + 2 * c_mid * (k + 4) + 5 * c_mid + 7 * c_out
    est = 4 * nl * rows
    try:
        cap = int(0.75 * pltpu.get_tpu_info().vmem_capacity_bytes)
    except Exception:
        cap = 48 * 1024 * 1024
    return int(min(cap, max(32 * 1024 * 1024, 4 * est)))


def complex_double_conv_1d(xr, xi, params):
    w1, b1, bn1, w2, b2, bn2 = params
    # conv biases are per-channel constants -> cancel exactly in the batch-stats
    # complex BN that follows (training-mode forward), so they are not sent to the kernel.
    del b1, b2
    n, c_in, length = xr.shape
    k = w1.shape[-1]
    c_mid = w1.shape[1]
    c_out = w2.shape[1]

    w1_blk = _pack_block_weight(w1)          # (2*Cmid, 2*Cin*K)
    w2_blk = _pack_block_weight(w2)          # (2*Cout, 2*Cmid*K)

    vmem = pl.BlockSpec(memory_space=pltpu.MemorySpace.VMEM)
    kernel = functools.partial(_double_conv_kernel,
                               n_batch=n, seg_len=length, k_taps=k)
    out_shape = (jax.ShapeDtypeStruct((n, c_out, length), jnp.float32),
                 jax.ShapeDtypeStruct((n, c_out, length), jnp.float32))

    out_r, out_i = pl.pallas_call(
        kernel,
        out_shape=out_shape,
        in_specs=[vmem] * 6,
        out_specs=(vmem, vmem),
        compiler_params=pltpu.CompilerParams(
            vmem_limit_bytes=_vmem_limit_bytes(n, c_in, c_mid, c_out, length, k)),
    )(xr, xi, w1_blk, bn1, w2_blk, bn2)
    return out_r, out_i


# --------------------------------------------------------------------------
# deterministic parameter init (shapes from the module's __init__)
# --------------------------------------------------------------------------
def init_params(key, in_ch, mid_ch, out_ch, k=3):
    ks = jax.random.split(key, 18)
    uni = lambda kk, shape, s: jax.random.uniform(kk, shape, jnp.float32, -s, s)
    s1 = 1.0 / math.sqrt(in_ch * k)
    s2 = 1.0 / math.sqrt(mid_ch * k)
    inv_sqrt2 = 1.0 / math.sqrt(2.0)

    w1 = jnp.stack([uni(ks[0], (mid_ch, in_ch, k), s1),
                    uni(ks[1], (mid_ch, in_ch, k), s1)])          # (2, Cmid, Cin, K)
    b1 = jnp.stack([uni(ks[2], (mid_ch, 1), s1),
                    uni(ks[3], (mid_ch, 1), s1)])                 # (2, Cmid, 1)
    bn1 = jnp.stack([inv_sqrt2 + 0.1 * uni(ks[4], (mid_ch, 1), 1.0),
                     inv_sqrt2 + 0.1 * uni(ks[5], (mid_ch, 1), 1.0),
                     0.1 * uni(ks[6], (mid_ch, 1), 1.0),
                     0.1 * uni(ks[7], (mid_ch, 1), 1.0),
                     0.1 * uni(ks[8], (mid_ch, 1), 1.0)])         # (5, Cmid, 1)

    w2 = jnp.stack([uni(ks[9], (out_ch, mid_ch, k), s2),
                    uni(ks[10], (out_ch, mid_ch, k), s2)])        # (2, Cout, Cmid, K)
    b2 = jnp.stack([uni(ks[11], (out_ch, 1), s2),
                    uni(ks[12], (out_ch, 1), s2)])                # (2, Cout, 1)
    bn2 = jnp.stack([inv_sqrt2 + 0.1 * uni(ks[13], (out_ch, 1), 1.0),
                     inv_sqrt2 + 0.1 * uni(ks[14], (out_ch, 1), 1.0),
                     0.1 * uni(ks[15], (out_ch, 1), 1.0),
                     0.1 * uni(ks[16], (out_ch, 1), 1.0),
                     0.1 * uni(ks[17], (out_ch, 1), 1.0)])        # (5, Cout, 1)
    return w1, b1, bn1, w2, b2, bn2


# --------------------------------------------------------------------------
# pure-JAX reference (lax.conv WITH biases + exact whitening BN) for sanity check
# (also validates that dropping the conv biases in the kernel is an exact no-op)
# --------------------------------------------------------------------------
def _mean_nl(x):
    return jnp.mean(jnp.mean(x, axis=2, keepdims=True), axis=0, keepdims=True)


def _complex_batchnorm_ref(yr, yi, g_rr, g_ii, g_ri, beta_r, beta_i, eps=EPS):
    mr = _mean_nl(yr)
    mi = _mean_nl(yi)
    cr = yr - mr
    ci = yi - mi
    crr = _mean_nl(cr * cr) + eps
    cii = _mean_nl(ci * ci) + eps
    cri = _mean_nl(cr * ci)
    det = crr * cii - cri * cri
    s = jnp.sqrt(det)
    t = jnp.sqrt(crr + cii + 2.0 * s)
    inv_st = 1.0 / (s * t)
    r_rr = (cii + s) * inv_st
    r_ii = (crr + s) * inv_st
    r_ri = -cri * inv_st
    nr = r_rr * cr + r_ri * ci
    ni = r_ri * cr + r_ii * ci
    zr = g_rr * nr + g_ri * ni + beta_r
    zi = g_ri * nr + g_ii * ni + beta_i
    return zr, zi


def reference_forward(xr, xi, w1, b1, bn1, w2, b2, bn2):
    def conv(x, w, b):
        y = jax.lax.conv_general_dilated(
            x, w, window_strides=(1,), padding=[(1, 1)],
            dimension_numbers=("NCH", "OIH", "NCH"),
            precision=jax.lax.Precision.HIGHEST)
        return y + b[None]                      # (C,1) -> (1,C,1)

    def cconv(ar, ai, w, b):
        wr, wi = w[0], w[1]
        br, bi = b[0], b[1]
        yr = conv(ar, wr, br) - conv(ai, wi, bi)
        yi = conv(ai, wr, br) + conv(ar, wi, bi)
        return yr, yi

    def block(ar, ai, w, b, bn):
        yr, yi = cconv(ar, ai, w, b)
        yr, yi = _complex_batchnorm_ref(yr, yi, bn[0], bn[1], bn[2], bn[3], bn[4])
        return jnp.maximum(yr, 0.0), jnp.maximum(yi, 0.0)

    yr, yi = block(xr, xi, w1, b1, bn1)
    return block(yr, yi, w2, b2, bn2)


if __name__ == "__main__":
    # mid_channels defaults to out_channels; L chosen as a 128 multiple -> lane-dense I/O
    N, C_IN, C_OUT, L = 2, 8, 16, 128

    key = jax.random.PRNGKey(0)
    kx, kxi, kp = jax.random.split(key, 3)
    x_real = jax.random.normal(kx, (N, C_IN, L), jnp.float32)
    x_imag = jax.random.normal(kxi, (N, C_IN, L), jnp.float32)

    params = init_params(kp, C_IN, C_OUT, C_OUT, k=3)

    out_r, out_i = complex_double_conv_1d(x_real, x_imag, params)
    jax.block_until_ready((out_r, out_i))

    ref_r, ref_i = reference_forward(x_real, x_imag, *params)
    assert out_r.shape == (N, C_OUT, L) and out_i.shape == (N, C_OUT, L)
    assert jnp.allclose(out_r, ref_r, atol=1e-3, rtol=1e-3), "real part mismatch"
    assert jnp.allclose(out_i, ref_i, atol=1e-3, rtol=1e-3), "imag part mismatch"

    print("KERNEL_OK")
</pallas_src>

<mosaic_0001>
module attributes {stable_mosaic.version = 11 : i64} {
  func.func @_double_conv_kernel(%arg0: memref<2x8x128xf32, #tpu.memory_space<vmem>>, %arg1: memref<2x8x128xf32, #tpu.memory_space<vmem>>, %arg2: memref<32x48xf32, #tpu.memory_space<vmem>>, %arg3: memref<5x16x1xf32, #tpu.memory_space<vmem>>, %arg4: memref<32x96xf32, #tpu.memory_space<vmem>>, %arg5: memref<5x16x1xf32, #tpu.memory_space<vmem>>, %arg6: memref<2x16x128xf32, #tpu.memory_space<vmem>>, %arg7: memref<2x16x128xf32, #tpu.memory_space<vmem>>) attributes {dimension_semantics = [], scalar_prefetch = 0 : i64, scratch_operands = 0 : i64, tpu.core_type = #tpu.core_type<tc>} {
    %0 = tpu.iota {dimensions = array<i32: 1>} : vector<1x256xi32>
    %c128_i32 = arith.constant 128 : i32
    %c0_i32 = arith.constant 0 : i32
    %1 = arith.cmpi eq, %c128_i32, %c0_i32 : i32
    %c1_i32 = arith.constant 1 : i32
    %2 = arith.select %1, %c1_i32, %c128_i32 : i32
    %3 = vector.broadcast %2 : i32 to vector<1x256xi32>
    %4 = arith.remsi %0, %3 : vector<1x256xi32>
    %c0_i32_0 = arith.constant 0 : i32
    %5 = vector.broadcast %c0_i32_0 : i32 to vector<1x256xi32>
    %6 = arith.cmpi ne, %4, %5 : vector<1x256xi32>
    %c0_i32_1 = arith.constant 0 : i32
    %7 = vector.broadcast %c0_i32_1 : i32 to vector<1x256xi32>
    %8 = arith.cmpi slt, %4, %7 : vector<1x256xi32>
    %c0_i32_2 = arith.constant 0 : i32
    %9 = arith.cmpi slt, %2, %c0_i32_2 : i32
    %10 = vector.broadcast %9 : i1 to vector<1x256xi1>
    %11 = vector.broadcast %10 : vector<1x256xi1> to vector<1x256xi1>
    %12 = arith.xori %8, %11 : vector<1x256xi1>
    %13 = arith.andi %12, %6 : vector<1x256xi1>
    %14 = vector.broadcast %2 : i32 to vector<1x256xi32>
    %15 = arith.addi %4, %14 : vector<1x256xi32>
    %16 = arith.select %13, %15, %4 : vector<1x256xi1>, vector<1x256xi32>
    %c-1_i32 = arith.constant -1 : i32
    %17 = vector.broadcast %c-1_i32 : i32 to vector<1x256xi32>
    %18 = arith.addi %16, %17 : vector<1x256xi32>
    %c0_i32_3 = arith.constant 0 : i32
    %19 = vector.broadcast %c0_i32_3 : i32 to vector<1x256xi32>
    %20 = arith.cmpi sge, %18, %19 : vector<1x256xi32>
    %c-1_i32_4 = arith.constant -1 : i32
    %21 = vector.broadcast %c-1_i32_4 : i32 to vector<1x256xi32>
    %22 = arith.addi %16, %21 : vector<1x256xi32>
    %c128_i32_5 = arith.constant 128 : i32
    %23 = vector.broadcast %c128_i32_5 : i32 to vector<1x256xi32>
    %24 = arith.cmpi slt, %22, %23 : vector<1x256xi32>
    %25 = arith.andi %20, %24 : vector<1x256xi1>
    %26 = arith.extui %25 : vector<1x256xi1> to vector<1x256xi32>
    %27 = arith.sitofp %26 : vector<1x256xi32> to vector<1x256xf32>
    %c1_i32_6 = arith.constant 1 : i32
    %28 = vector.broadcast %c1_i32_6 : i32 to vector<1x256xi32>
    %29 = arith.addi %16, %28 : vector<1x256xi32>
    %c0_i32_7 = arith.constant 0 : i32
    %30 = vector.broadcast %c0_i32_7 : i32 to vector<1x256xi32>
    %31 = arith.cmpi sge, %29, %30 : vector<1x256xi32>
    %c1_i32_8 = arith.constant 1 : i32
    %32 = vector.broadcast %c1_i32_8 : i32 to vector<1x256xi32>
    %33 = arith.addi %16, %32 : vector<1x256xi32>
    %c128_i32_9 = arith.constant 128 : i32
    %34 = vector.broadcast %c128_i32_9 : i32 to vector<1x256xi32>
    %35 = arith.cmpi slt, %33, %34 : vector<1x256xi32>
    %36 = arith.andi %31, %35 : vector<1x256xi1>
    %37 = arith.extui %36 : vector<1x256xi1> to vector<1x256xi32>
    %38 = arith.sitofp %37 : vector<1x256xi32> to vector<1x256xf32>
    %cst = arith.constant 1.000000e+00 : f32
    %39 = vector.broadcast %cst : f32 to vector<256x1xf32>
    %c0 = arith.constant 0 : index
    %c0_10 = arith.constant 0 : index
    %c0_11 = arith.constant 0 : index
    %40 = vector.load %arg0[%c0, %c0_10, %c0_11] : memref<2x8x128xf32, #tpu.memory_space<vmem>>, vector<1x8x128xf32>
    %41 = vector.shape_cast %40 : vector<1x8x128xf32> to vector<8x128xf32>
    %c1 = arith.constant 1 : index
    %c0_12 = arith.constant 0 : index
    %c0_13 = arith.constant 0 : index
    %42 = vector.load %arg0[%c1, %c0_12, %c0_13] : memref<2x8x128xf32, #tpu.memory_space<vmem>>, vector<1x8x128xf32>
    %43 = vector.shape_cast %42 : vector<1x8x128xf32> to vector<8x128xf32>
    %44 = tpu.concatenate %41, %43 in 1 : vector<8x128xf32>, vector<8x128xf32> -> vector<8x256xf32>
    %c0_14 = arith.constant 0 : index
    %c0_15 = arith.constant 0 : index
    %c0_16 = arith.constant 0 : index
    %45 = vector.load %arg1[%c0_14, %c0_15, %c0_16] : memref<2x8x128xf32, #tpu.memory_space<vmem>>, vector<1x8x128xf32>
    %46 = vector.shape_cast %45 : vector<1x8x128xf32> to vector<8x128xf32>
    %c1_17 = arith.constant 1 : index
    %c0_18 = arith.constant 0 : index
    %c0_19 = arith.constant 0 : index
    %47 = vector.load %arg1[%c1_17, %c0_18, %c0_19] : memref<2x8x128xf32, #tpu.memory_space<vmem>>, vector<1x8x128xf32>
    %48 = vector.shape_cast %47 : vector<1x8x128xf32> to vector<8x128xf32>
    %49 = tpu.concatenate %46, %48 in 1 : vector<8x128xf32>, vector<8x128xf32> -> vector<8x256xf32>
    %50 = tpu.concatenate %44, %49 in 0 : vector<8x256xf32>, vector<8x256xf32> -> vector<16x256xf32>
    %c1_i32_20 = arith.constant 1 : i32
    %51 = tpu.dynamic_rotate %50 by %c1_i32_20 dim 1 : vector<16x256xf32>, i32 -> vector<16x256xf32>
    %52 = vector.broadcast %27 : vector<1x256xf32> to vector<16x256xf32>
    %53 = arith.mulf %51, %52 : vector<16x256xf32>
    %c255_i32 = arith.constant 255 : i32
    %54 = tpu.dynamic_rotate %50 by %c255_i32 dim 1 : vector<16x256xf32>, i32 -> vector<16x256xf32>
    %55 = vector.broadcast %38 : vector<1x256xf32> to vector<16x256xf32>
    %56 = arith.mulf %54, %55 : vector<16x256xf32>
    %57 = tpu.concatenate %53, %50, %56 in 0 : vector<16x256xf32>, vector<16x256xf32>, vector<16x256xf32> -> vector<48x256xf32>
    %c0_21 = arith.constant 0 : index
    %c0_22 = arith.constant 0 : index
    %58 = vector.load %arg2[%c0_21, %c0_22] : memref<32x48xf32, #tpu.memory_space<vmem>>, vector<32x48xf32>
    %cst_23 = arith.constant dense<0.000000e+00> : vector<32x256xf32>
    %59 = tpu.matmul %58, %57, %cst_23 {dimension_numbers = #tpu.dot_dimension_numbers<[1], [0], [0], [1], [0, 0, 1, 1], [], []>} : vector<32x48xf32>, vector<48x256xf32>, vector<32x256xf32> -> vector<32x256xf32>
    %60 = vector.extract_strided_slice %59 {offsets = [0, 0], sizes = [16, 256], strides = [1, 1]} : vector<32x256xf32> to vector<16x256xf32>
    %61 = vector.extract_strided_slice %59 {offsets = [16, 0], sizes = [16, 256], strides = [1, 1]} : vector<32x256xf32> to vector<16x256xf32>
    %62 = arith.mulf %59, %59 : vector<32x256xf32>
    %63 = arith.mulf %60, %61 : vector<16x256xf32>
    %64 = tpu.concatenate %59, %62, %63 in 0 : vector<32x256xf32>, vector<32x256xf32>, vector<16x256xf32> -> vector<80x256xf32>
    %cst_24 = arith.constant dense<0.000000e+00> : vector<80x1xf32>
    %65 = tpu.matmul %64, %39, %cst_24 {dimension_numbers = #tpu.dot_dimension_numbers<[1], [0], [0], [1], [0, 0, 1, 1], [], []>} : vector<80x256xf32>, vector<256x1xf32>, vector<80x1xf32> -> vector<80x1xf32>
    %cst_25 = arith.constant 3.906250e-03 : f32
    %66 = vector.broadcast %cst_25 : f32 to vector<80x1xf32>
    %67 = arith.mulf %65, %66 : vector<80x1xf32>
    %68 = vector.extract_strided_slice %67 {offsets = [0, 0], sizes = [16, 1], strides = [1, 1]} : vector<80x1xf32> to vector<16x1xf32>
    %69 = vector.extract_strided_slice %67 {offsets = [16, 0], sizes = [16, 1], strides = [1, 1]} : vector<80x1xf32> to vector<16x1xf32>
    %70 = vector.extract_strided_slice %67 {offsets = [32, 0], sizes = [16, 1], strides = [1, 1]} : vector<80x1xf32> to vector<16x1xf32>
    %71 = arith.mulf %68, %68 : vector<16x1xf32>
    %72 = arith.subf %70, %71 : vector<16x1xf32>
    %cst_26 = arith.constant 9.99999974E-6 : f32
    %73 = vector.broadcast %cst_26 : f32 to vector<16x1xf32>
    %74 = arith.addf %72, %73 : vector<16x1xf32>
    %75 = vector.extract_strided_slice %67 {offsets = [48, 0], sizes = [16, 1], strides = [1, 1]} : vector<80x1xf32> to vector<16x1xf32>
    %76 = arith.mulf %69, %69 : vector<16x1xf32>
    %77 = arith.subf %75, %76 : vector<16x1xf32>
    %cst_27 = arith.constant 9.99999974E-6 : f32
    %78 = vector.broadcast %cst_27 : f32 to vector<16x1xf32>
    %79 = arith.addf %77, %78 : vector<16x1xf32>
    %80 = vector.extract_strided_slice %67 {offsets = [64, 0], sizes = [16, 1], strides = [1, 1]} : vector<80x1xf32> to vector<16x1xf32>
    %81 = arith.mulf %68, %69 : vector<16x1xf32>
    %82 = arith.subf %80, %81 : vector<16x1xf32>
    %83 = arith.mulf %74, %79 : vector<16x1xf32>
    %84 = arith.mulf %82, %82 : vector<16x1xf32>
    %85 = arith.subf %83, %84 : vector<16x1xf32>
    %86 = math.sqrt %85 : vector<16x1xf32>
    %87 = math.rsqrt %85 : vector<16x1xf32>
    %88 = arith.addf %74, %79 : vector<16x1xf32>
    %cst_28 = arith.constant 2.000000e+00 : f32
    %89 = vector.broadcast %cst_28 : f32 to vector<16x1xf32>
    %90 = arith.mulf %89, %86 : vector<16x1xf32>
    %91 = arith.addf %88, %90 : vector<16x1xf32>
    %92 = math.rsqrt %91 : vector<16x1xf32>
    %93 = arith.mulf %87, %92 : vector<16x1xf32>
    %94 = arith.addf %79, %86 : vector<16x1xf32>
    %95 = arith.mulf %94, %93 : vector<16x1xf32>
    %96 = arith.addf %74, %86 : vector<16x1xf32>
    %97 = arith.mulf %96, %93 : vector<16x1xf32>
    %cst_29 = arith.constant 0.000000e+00 : f32
    %98 = vector.broadcast %cst_29 : f32 to vector<16x1xf32>
    %99 = arith.subf %98, %82 : vector<16x1xf32>
    %100 = arith.mulf %99, %93 : vector<16x1xf32>
    %c0_30 = arith.constant 0 : index
    %c0_31 = arith.constant 0 : index
    %c0_32 = arith.constant 0 : index
    %101 = vector.load %arg3[%c0_30, %c0_31, %c0_32] : memref<5x16x1xf32, #tpu.memory_space<vmem>>, vector<1x16x1xf32>
    %102 = vector.shape_cast %101 : vector<1x16x1xf32> to vector<16x1xf32>
    %c1_33 = arith.constant 1 : index
    %c0_34 = arith.constant 0 : index
    %c0_35 = arith.constant 0 : index
    %103 = vector.load %arg3[%c1_33, %c0_34, %c0_35] : memref<5x16x1xf32, #tpu.memory_space<vmem>>, vector<1x16x1xf32>
    %104 = vector.shape_cast %103 : vector<1x16x1xf32> to vector<16x1xf32>
    %c2 = arith.constant 2 : index
    %c0_36 = arith.constant 0 : index
    %c0_37 = arith.constant 0 : index
    %105 = vector.load %arg3[%c2, %c0_36, %c0_37] : memref<5x16x1xf32, #tpu.memory_space<vmem>>, vector<1x16x1xf32>
    %106 = vector.shape_cast %105 : vector<1x16x1xf32> to vector<16x1xf32>
    %c3 = arith.constant 3 : index
    %c0_38 = arith.constant 0 : index
    %c0_39 = arith.constant 0 : index
    %107 = vector.load %arg3[%c3, %c0_38, %c0_39] : memref<5x16x1xf32, #tpu.memory_space<vmem>>, vector<1x16x1xf32>
    %108 = vector.shape_cast %107 : vector<1x16x1xf32> to vector<16x1xf32>
    %c4 = arith.constant 4 : index
    %c0_40 = arith.constant 0 : index
    %c0_41 = arith.constant 0 : index
    %109 = vector.load %arg3[%c4, %c0_40, %c0_41] : memref<5x16x1xf32, #tpu.memory_space<vmem>>, vector<1x16x1xf32>
    %110 = vector.shape_cast %109 : vector<1x16x1xf32> to vector<16x1xf32>
    %111 = arith.mulf %102, %95 : vector<16x1xf32>
    %112 = arith.mulf %106, %100 : vector<16x1xf32>
    %113 = arith.addf %111, %112 : vector<16x1xf32>
    %114 = arith.mulf %102, %100 : vector<16x1xf32>
    %115 = arith.mulf %106, %97 : vector<16x1xf32>
    %116 = arith.addf %114, %115 : vector<16x1xf32>
    %117 = arith.mulf %106, %95 : vector<16x1xf32>
    %118 = arith.mulf %104, %100 : vector<16x1xf32>
    %119 = arith.addf %117, %118 : vector<16x1xf32>
    %120 = arith.mulf %106, %100 : vector<16x1xf32>
    %121 = arith.mulf %104, %97 : vector<16x1xf32>
    %122 = arith.addf %120, %121 : vector<16x1xf32>
    %123 = arith.mulf %113, %68 : vector<16x1xf32>
    %124 = arith.mulf %116, %69 : vector<16x1xf32>
    %125 = arith.addf %123, %124 : vector<16x1xf32>
    %126 = arith.subf %108, %125 : vector<16x1xf32>
    %127 = arith.mulf %119, %68 : vector<16x1xf32>
    %128 = arith.mulf %122, %69 : vector<16x1xf32>
    %129 = arith.addf %127, %128 : vector<16x1xf32>
    %130 = arith.subf %110, %129 : vector<16x1xf32>
    %131 = vector.broadcast %113 : vector<16x1xf32> to vector<16x256xf32>
    %132 = arith.mulf %131, %60 : vector<16x256xf32>
    %133 = vector.broadcast %116 : vector<16x1xf32> to vector<16x256xf32>
    %134 = arith.mulf %133, %61 : vector<16x256xf32>
    %135 = arith.addf %132, %134 : vector<16x256xf32>
    %136 = vector.broadcast %126 : vector<16x1xf32> to vector<16x256xf32>
    %137 = arith.addf %135, %136 : vector<16x256xf32>
    %cst_42 = arith.constant 0.000000e+00 : f32
    %138 = vector.broadcast %cst_42 : f32 to vector<16x256xf32>
    %139 = arith.maximumf %137, %138 : vector<16x256xf32>
    %140 = vector.broadcast %119 : vector<16x1xf32> to vector<16x256xf32>
    %141 = arith.mulf %140, %60 : vector<16x256xf32>
    %142 = vector.broadcast %122 : vector<16x1xf32> to vector<16x256xf32>
    %143 = arith.mulf %142, %61 : vector<16x256xf32>
    %144 = arith.addf %141, %143 : vector<16x256xf32>
    %145 = vector.broadcast %130 : vector<16x1xf32> to vector<16x256xf32>
    %146 = arith.addf %144, %145 : vector<16x256xf32>
    %cst_43 = arith.constant 0.000000e+00 : f32
    %147 = vector.broadcast %cst_43 : f32 to vector<16x256xf32>
    %148 = arith.maximumf %146, %147 : vector<16x256xf32>
    %149 = tpu.concatenate %139, %148 in 0 : vector<16x256xf32>, vector<16x256xf32> -> vector<32x256xf32>
    %c1_i32_44 = arith.constant 1 : i32
    %150 = tpu.dynamic_rotate %149 by %c1_i32_44 dim 1 : vector<32x256xf32>, i32 -> vector<32x256xf32>
    %151 = vector.broadcast %27 : vector<1x256xf32> to vector<32x256xf32>
    %152 = arith.mulf %150, %151 : vector<32x256xf32>
    %c255_i32_45 = arith.constant 255 : i32
    %153 = tpu.dynamic_rotate %149 by %c255_i32_45 dim 1 : vector<32x256xf32>, i32 -> vector<32x256xf32>
    %154 = vector.broadcast %38 : vector<1x256xf32> to vector<32x256xf32>
    %155 = arith.mulf %153, %154 : vector<32x256xf32>
    %156 = tpu.concatenate %152, %149, %155 in 0 : vector<32x256xf32>, vector<32x256xf32>, vector<32x256xf32> -> vector<96x256xf32>
    %c0_46 = arith.constant 0 : index
    %c0_47 = arith.constant 0 : index
    %157 = vector.load %arg4[%c0_46, %c0_47] : memref<32x96xf32, #tpu.memory_space<vmem>>, vector<32x96xf32>
    %cst_48 = arith.constant dense<0.000000e+00> : vector<32x256xf32>
    %158 = tpu.matmul %157, %156, %cst_48 {dimension_numbers = #tpu.dot_dimension_numbers<[1], [0], [0], [1], [0, 0, 1, 1], [], []>} : vector<32x96xf32>, vector<96x256xf32>, vector<32x256xf32> -> vector<32x256xf32>
    %159 = vector.extract_strided_slice %158 {offsets = [0, 0], sizes = [16, 256], strides = [1, 1]} : vector<32x256xf32> to vector<16x256xf32>
    %160 = vector.extract_strided_slice %158 {offsets = [16, 0], sizes = [16, 256], strides = [1, 1]} : vector<32x256xf32> to vector<16x256xf32>
    %161 = arith.mulf %158, %158 : vector<32x256xf32>
    %162 = arith.mulf %159, %160 : vector<16x256xf32>
    %163 = tpu.concatenate %158, %161, %162 in 0 : vector<32x256xf32>, vector<32x256xf32>, vector<16x256xf32> -> vector<80x256xf32>
    %cst_49 = arith.constant dense<0.000000e+00> : vector<80x1xf32>
    %164 = tpu.matmul %163, %39, %cst_49 {dimension_numbers = #tpu.dot_dimension_numbers<[1], [0], [0], [1], [0, 0, 1, 1], [], []>} : vector<80x256xf32>, vector<256x1xf32>, vector<80x1xf32> -> vector<80x1xf32>
    %cst_50 = arith.constant 3.906250e-03 : f32
    %165 = vector.broadcast %cst_50 : f32 to vector<80x1xf32>
    %166 = arith.mulf %164, %165 : vector<80x1xf32>
    %167 = vector.extract_strided_slice %166 {offsets = [0, 0], sizes = [16, 1], strides = [1, 1]} : vector<80x1xf32> to vector<16x1xf32>
    %168 = vector.extract_strided_slice %166 {offsets = [16, 0], sizes = [16, 1], strides = [1, 1]} : vector<80x1xf32> to vector<16x1xf32>
    %169 = vector.extract_strided_slice %166 {offsets = [32, 0], sizes = [16, 1], strides = [1, 1]} : vector<80x1xf32> to vector<16x1xf32>
    %170 = arith.mulf %167, %167 : vector<16x1xf32>
    %171 = arith.subf %169, %170 : vector<16x1xf32>
    %cst_51 = arith.constant 9.99999974E-6 : f32
    %172 = vector.broadcast %cst_51 : f32 to vector<16x1xf32>
    %173 = arith.addf %171, %172 : vector<16x1xf32>
    %174 = vector.extract_strided_slice %166 {offsets = [48, 0], sizes = [16, 1], strides = [1, 1]} : vector<80x1xf32> to vector<16x1xf32>
    %175 = arith.mulf %168, %168 : vector<16x1xf32>
    %176 = arith.subf %174, %175 : vector<16x1xf32>
    %cst_52 = arith.constant 9.99999974E-6 : f32
    %177 = vector.broadcast %cst_52 : f32 to vector<16x1xf32>
    %178 = arith.addf %176, %177 : vector<16x1xf32>
    %179 = vector.extract_strided_slice %166 {offsets = [64, 0], sizes = [16, 1], strides = [1, 1]} : vector<80x1xf32> to vector<16x1xf32>
    %180 = arith.mulf %167, %168 : vector<16x1xf32>
    %181 = arith.subf %179, %180 : vector<16x1xf32>
    %182 = arith.mulf %173, %178 : vector<16x1xf32>
    %183 = arith.mulf %181, %181 : vector<16x1xf32>
    %184 = arith.subf %182, %183 : vector<16x1xf32>
    %185 = math.sqrt %184 : vector<16x1xf32>
    %186 = math.rsqrt %184 : vector<16x1xf32>
    %187 = arith.addf %173, %178 : vector<16x1xf32>
    %cst_53 = arith.constant 2.000000e+00 : f32
    %188 = vector.broadcast %cst_53 : f32 to vector<16x1xf32>
    %189 = arith.mulf %188, %185 : vector<16x1xf32>
    %190 = arith.addf %187, %189 : vector<16x1xf32>
    %191 = math.rsqrt %190 : vector<16x1xf32>
    %192 = arith.mulf %186, %191 : vector<16x1xf32>
    %193 = arith.addf %178, %185 : vector<16x1xf32>
    %194 = arith.mulf %193, %192 : vector<16x1xf32>
    %195 = arith.addf %173, %185 : vector<16x1xf32>
    %196 = arith.mulf %195, %192 : vector<16x1xf32>
    %cst_54 = arith.constant 0.000000e+00 : f32
    %197 = vector.broadcast %cst_54 : f32 to vector<16x1xf32>
    %198 = arith.subf %197, %181 : vector<16x1xf32>
    %199 = arith.mulf %198, %192 : vector<16x1xf32>
    %c0_55 = arith.constant 0 : index
    %c0_56 = arith.constant 0 : index
    %c0_57 = arith.constant 0 : index
    %200 = vector.load %arg5[%c0_55, %c0_56, %c0_57] : memref<5x16x1xf32, #tpu.memory_space<vmem>>, vector<1x16x1xf32>
    %201 = vector.shape_cast %200 : vector<1x16x1xf32> to vector<16x1xf32>
    %c1_58 = arith.constant 1 : index
    %c0_59 = arith.constant 0 : index
    %c0_60 = arith.constant 0 : index
    %202 = vector.load %arg5[%c1_58, %c0_59, %c0_60] : memref<5x16x1xf32, #tpu.memory_space<vmem>>, vector<1x16x1xf32>
    %203 = vector.shape_cast %202 : vector<1x16x1xf32> to vector<16x1xf32>
    %c2_61 = arith.constant 2 : index
    %c0_62 = arith.constant 0 : index
    %c0_63 = arith.constant 0 : index
    %204 = vector.load %arg5[%c2_61, %c0_62, %c0_63] : memref<5x16x1xf32, #tpu.memory_space<vmem>>, vector<1x16x1xf32>
    %205 = vector.shape_cast %204 : vector<1x16x1xf32> to vector<16x1xf32>
    %c3_64 = arith.constant 3 : index
    %c0_65 = arith.constant 0 : index
    %c0_66 = arith.constant 0 : index
    %206 = vector.load %arg5[%c3_64, %c0_65, %c0_66] : memref<5x16x1xf32, #tpu.memory_space<vmem>>, vector<1x16x1xf32>
    %207 = vector.shape_cast %206 : vector<1x16x1xf32> to vector<16x1xf32>
    %c4_67 = arith.constant 4 : index
    %c0_68 = arith.constant 0 : index
    %c0_69 = arith.constant 0 : index
    %208 = vector.load %arg5[%c4_67, %c0_68, %c0_69] : memref<5x16x1xf32, #tpu.memory_space<vmem>>, vector<1x16x1xf32>
    %209 = vector.shape_cast %208 : vector<1x16x1xf32> to vector<16x1xf32>
    %210 = arith.mulf %201, %194 : vector<16x1xf32>
    %211 = arith.mulf %205, %199 : vector<16x1xf32>
    %212 = arith.addf %210, %211 : vector<16x1xf32>
    %213 = arith.mulf %201, %199 : vector<16x1xf32>
    %214 = arith.mulf %205, %196 : vector<16x1xf32>
    %215 = arith.addf %213, %214 : vector<16x1xf32>
    %216 = arith.mulf %205, %194 : vector<16x1xf32>
    %217 = arith.mulf %203, %199 : vector<16x1xf32>
    %218 = arith.addf %216, %217 : vector<16x1xf32>
    %219 = arith.mulf %205, %199 : vector<16x1xf32>
    %220 = arith.mulf %203, %196 : vector<16x1xf32>
    %221 = arith.addf %219, %220 : vector<16x1xf32>
    %222 = arith.mulf %212, %167 : vector<16x1xf32>
    %223 = arith.mulf %215, %168 : vector<16x1xf32>
    %224 = arith.addf %222, %223 : vector<16x1xf32>
    %225 = arith.subf %207, %224 : vector<16x1xf32>
    %226 = arith.mulf %218, %167 : vector<16x1xf32>
    %227 = arith.mulf %221, %168 : vector<16x1xf32>
    %228 = arith.addf %226, %227 : vector<16x1xf32>
    %229 = arith.subf %209, %228 : vector<16x1xf32>
    %230 = vector.broadcast %212 : vector<16x1xf32> to vector<16x256xf32>
    %231 = arith.mulf %230, %159 : vector<16x256xf32>
    %232 = vector.broadcast %215 : vector<16x1xf32> to vector<16x256xf32>
    %233 = arith.mulf %232, %160 : vector<16x256xf32>
    %234 = arith.addf %231, %233 : vector<16x256xf32>
    %235 = vector.broadcast %225 : vector<16x1xf32> to vector<16x256xf32>
    %236 = arith.addf %234, %235 : vector<16x256xf32>
    %cst_70 = arith.constant 0.000000e+00 : f32
    %237 = vector.broadcast %cst_70 : f32 to vector<16x256xf32>
    %238 = arith.maximumf %236, %237 : vector<16x256xf32>
    %239 = vector.broadcast %218 : vector<16x1xf32> to vector<16x256xf32>
    %240 = arith.mulf %239, %159 : vector<16x256xf32>
    %241 = vector.broadcast %221 : vector<16x1xf32> to vector<16x256xf32>
    %242 = arith.mulf %241, %160 : vector<16x256xf32>
    %243 = arith.addf %240, %242 : vector<16x256xf32>
    %244 = vector.broadcast %229 : vector<16x1xf32> to vector<16x256xf32>
    %245 = arith.addf %243, %244 : vector<16x256xf32>
    %cst_71 = arith.constant 0.000000e+00 : f32
    %246 = vector.broadcast %cst_71 : f32 to vector<16x256xf32>
    %247 = arith.maximumf %245, %246 : vector<16x256xf32>
    %248 = vector.extract_strided_slice %238 {offsets = [0, 0], sizes = [16, 128], strides = [1, 1]} : vector<16x256xf32> to vector<16x128xf32>
    %c0_72 = arith.constant 0 : index
    %c0_73 = arith.constant 0 : index
    %c0_74 = arith.constant 0 : index
    %249 = vector.load %arg6[%c0_72, %c0_73, %c0_74] : memref<2x16x128xf32, #tpu.memory_space<vmem>>, vector<1x16x128xf32>
    %250 = vector.shape_cast %249 : vector<1x16x128xf32> to vector<16x128xf32>
    %251 = vector.shape_cast %248 : vector<16x128xf32> to vector<1x16x128xf32>
    tpu.vector_store %arg6[%c0_72, %c0_73, %c0_74], %251 {strides = array<i32>} : memref<2x16x128xf32, #tpu.memory_space<vmem>>, vector<1x16x128xf32>,
    %252 = vector.extract_strided_slice %247 {offsets = [0, 0], sizes = [16, 128], strides = [1, 1]} : vector<16x256xf32> to vector<16x128xf32>
    %c0_75 = arith.constant 0 : index
    %c0_76 = arith.constant 0 : index
    %c0_77 = arith.constant 0 : index
    %253 = vector.load %arg7[%c0_75, %c0_76, %c0_77] : memref<2x16x128xf32, #tpu.memory_space<vmem>>, vector<1x16x128xf32>
    %254 = vector.shape_cast %253 : vector<1x16x128xf32> to vector<16x128xf32>
    %255 = vector.shape_cast %252 : vector<16x128xf32> to vector<1x16x128xf32>
    tpu.vector_store %arg7[%c0_75, %c0_76, %c0_77], %255 {strides = array<i32>} : memref<2x16x128xf32, #tpu.memory_space<vmem>>, vector<1x16x128xf32>,
    %256 = vector.extract_strided_slice %238 {offsets = [0, 128], sizes = [16, 128], strides = [1, 1]} : vector<16x256xf32> to vector<16x128xf32>
    %c1_78 = arith.constant 1 : index
    %c0_79 = arith.constant 0 : index
    %c0_80 = arith.constant 0 : index
    %257 = vector.load %arg6[%c1_78, %c0_79, %c0_80] : memref<2x16x128xf32, #tpu.memory_space<vmem>>, vector<1x16x128xf32>
    %258 = vector.shape_cast %257 : vector<1x16x128xf32> to vector<16x128xf32>
    %259 = vector.shape_cast %256 : vector<16x128xf32> to vector<1x16x128xf32>
    tpu.vector_store %arg6[%c1_78, %c0_79, %c0_80], %259 {strides = array<i32>} : memref<2x16x128xf32, #tpu.memory_space<vmem>>, vector<1x16x128xf32>,
    %260 = vector.extract_strided_slice %247 {offsets = [0, 128], sizes = [16, 128], strides = [1, 1]} : vector<16x256xf32> to vector<16x128xf32>
    %c1_81 = arith.constant 1 : index
    %c0_82 = arith.constant 0 : index
    %c0_83 = arith.constant 0 : index
    %261 = vector.load %arg7[%c1_81, %c0_82, %c0_83] : memref<2x16x128xf32, #tpu.memory_space<vmem>>, vector<1x16x128xf32>
    %262 = vector.shape_cast %261 : vector<1x16x128xf32> to vector<16x128xf32>
    %263 = vector.shape_cast %260 : vector<16x128xf32> to vector<1x16x128xf32>
    tpu.vector_store %arg7[%c1_81, %c0_82, %c0_83], %263 {strides = array<i32>} : memref<2x16x128xf32, #tpu.memory_space<vmem>>, vector<1x16x128xf32>,
    return
  }
}

</mosaic_0001>

<llo_original>
// kernel: tpu_custom_call.1
$region0: #{tpu_custom_call.1}
  #allocation0 [shape = 'u32[]', space=smem, size = 0x4, offset = 0x4, fixed_abs, tag = 'smem constant byte address 0x4 - core index']
  #allocation1 [shape = 'u32[144,128]{1,0:T(1,128)}', space=vmem, size = 0x12000, scoped, tag = 'internal scratch']
  %s0 = inlined_call_operand.vmem [shape: f32[2,8,128], index: 0, kind: input, shape index: {}]
  %s1 = inlined_call_operand.vmem [shape: f32[2,8,128], index: 1, kind: input, shape index: {}]
  %s2 = inlined_call_operand.vmem [shape: f32[32,48], index: 2, kind: input, shape index: {}]
  %s3 = inlined_call_operand.vmem [shape: f32[5,16,1], index: 3, kind: input, shape index: {}]
  %s4 = inlined_call_operand.vmem [shape: f32[32,96], index: 4, kind: input, shape index: {}]
  %s5 = inlined_call_operand.vmem [shape: f32[5,16,1], index: 5, kind: input, shape index: {}]
  %s6 = inlined_call_operand.hbm [shape: f32[2,16,128], index: 6, kind: output, shape index: {0}]
  %s7 = inlined_call_operand.hbm [shape: f32[2,16,128], index: 7, kind: output, shape index: {1}]
  %8 = xla_tuple %s6, %s7
  %s9 = sld [smem:[#allocation0]]
  $region42: #{tpu_custom_call.1} parent=0
    _
  %s11 = ssub.s32 1, %s9
  %s12 = scalar_select 0, %s11, %s9
  $region1: #{tpu_custom_call.1} parent=0
    #allocation2 [shape = 'u8[16384]{0}', space=vmem, size = 0x4000, scoped, tag = 'output window, operand 0, single buffered']
    #allocation3 [shape = 's32[1]{0}', space=sflag, size = 0x4, scoped, tag = 'scoped memory for tpu_custom_call.1']
    #allocation4 [shape = 'u8[16384]{0}', space=vmem, size = 0x4000, scoped, tag = 'output window, operand 1, single buffered']
    #allocation5 [shape = 's32[1]{0}', space=sflag, size = 0x4, scoped, tag = 'scoped memory for tpu_custom_call.1']
    %13 = vsyncpa [#allocation3], 0
    %14 = vsyncpa [#allocation5], 0
    // Predicated region
    $region2: #{tpu_custom_call.1} parent=1 // pred_check
      _
    $region3: #{tpu_custom_call.1} parent=1 // pred_check_branch
      %16 = sbr.rel (0) target = $region5
    $region4: #{tpu_custom_call.1} parent=1 // pred_region
      _
    $region5: #{tpu_custom_call.1} parent=1 // pred_fallthru
      _
    // Predicated region
    $region6: #{tpu_custom_call.1} parent=1 // pred_check
      _
    $region7: #{tpu_custom_call.1} parent=1 // pred_check_branch
      %18 = sbr.rel (0) target = $region9
    $region8: #{tpu_custom_call.1} parent=1 // pred_region
      _
    $region9: #{tpu_custom_call.1} parent=1 // pred_fallthru
      _
    // Predicated region
    $region10: #{tpu_custom_call.1} parent=1 // pred_check
      _
    $region11: #{tpu_custom_call.1} parent=1 // pred_check_branch
      %20 = sbr.rel (0) target = $region13
    $region12: #{tpu_custom_call.1} parent=1 // pred_region
      _
    $region13: #{tpu_custom_call.1} parent=1 // pred_fallthru
      _
    // Predicated region
    $region14: #{tpu_custom_call.1} parent=1 // pred_check
      _
    $region15: #{tpu_custom_call.1} parent=1 // pred_check_branch
      %22 = sbr.rel (0) target = $region17
    $region16: #{tpu_custom_call.1} parent=1 // pred_region
      _
    $region17: #{tpu_custom_call.1} parent=1 // pred_fallthru
      _
    // Predicated region
    $region18: #{tpu_custom_call.1} parent=1 // pred_check
      _
    $region19: #{tpu_custom_call.1} parent=1 // pred_check_branch
      %24 = sbr.rel (0) target = $region21
    $region20: #{tpu_custom_call.1} parent=1 // pred_region
      _
    $region21: #{tpu_custom_call.1} parent=1 // pred_fallthru
      _
    // Predicated region
    $region22: #{tpu_custom_call.1} parent=1 // pred_check
      _
    $region23: #{tpu_custom_call.1} parent=1 // pred_check_branch
      %26 = sbr.rel (0) target = $region25
    $region24: #{tpu_custom_call.1} parent=1 // pred_region
      _
    $region25: #{tpu_custom_call.1} parent=1 // pred_fallthru
      _
    %v27 = vlaneseq
    %v28 = vand.u32 %v27, 127
    %v29 = vadd.s32 %v28, 128
    %vm30 = vcmp.lt.s32.totalorder %v28, 0
    %v31 = vsub.s32 0, %v28
    %v32 = vsel %vm30, %v31, %v28
    %v33 = vshrl.u32 %v32, 7
    %v34 = vand.u32 %v32, 127
    %v35 = vsub.s32 0, %v34
    %v36 = vsel %vm30, %v35, %v34
    %vm37 = vcmp.lt.s32.totalorder %v29, 0
    %v38 = vsub.s32 0, %v29
    %v39 = vsel %vm37, %v38, %v29
    %v40 = vshrl.u32 %v39, 7
    %v41 = vand.u32 %v39, 127
    %v42 = vsub.s32 0, %v41
    %v43 = vsel %vm37, %v42, %v41
    %vm44 = vcmp.ne.s32.totalorder %v36, 0
    %vm45 = vcmp.ne.s32.totalorder %v43, 0
    %vm46 = vcmp.lt.s32.totalorder %v36, 0
    %vm47 = vcmp.lt.s32.totalorder %v43, 0
    %vm48 = vmand %vm46, %vm44
    %vm49 = vmand %vm47, %vm45
    %v50 = vadd.s32 %v36, 128
    %v51 = vadd.s32 %v43, 128
    %v52 = vsel %vm48, %v50, %v36
    %v53 = vsel %vm49, %v51, %v43
    %v54 = vadd.s32 %v52, 4294967295
    %v55 = vadd.s32 %v53, 4294967295
    %vm56 = vcmp.ge.s32.totalorder %v54, 0
    %vm57 = vcmp.ge.s32.totalorder %v55, 0
    %vm58 = vcmp.lt.s32.totalorder %v54, 128
    %vm59 = vcmp.lt.s32.totalorder %v55, 128
    %vm60 = vmand %vm56, %vm58
    %vm61 = vmand %vm57, %vm59
    %v62 = vsel %vm60, 1, 0
    %v63 = vsel %vm61, 1, 0
    %v64 = vcvt.s32.f32 %v62
    %v65 = vcvt.s32.f32 %v63
    %v66 = vadd.s32 %v52, 1
    %v67 = vadd.s32 %v53, 1
    %vm68 = vcmp.ge.s32.totalorder %v66, 0
    %vm69 = vcmp.ge.s32.totalorder %v67, 0
    %vm70 = vcmp.lt.s32.totalorder %v66, 128
    %vm71 = vcmp.lt.s32.totalorder %v67, 128
    %vm72 = vmand %vm68, %vm70
    %vm73 = vmand %vm69, %vm71
    %v74 = vsel %vm72, 1, 0
    %v75 = vsel %vm73, 1, 0
    %v76 = vcvt.s32.f32 %v74
    %v77 = vcvt.s32.f32 %v75
    %v78 = vld [vmem:[%s0] sm:$0xff]
    %s79 = scalar_lea.vmem %s0, 8
    %v80 = vld [vmem:[%s79] sm:$0xff]
    %v81 = vld [vmem:[%s1] sm:$0xff]
    %s82 = scalar_lea.vmem %s1, 8
    %v83 = vld [vmem:[%s82] sm:$0xff]
    %84 = vrot.lane.b32.xlu0 %v78, 1
    %v85 = vpop.permute.xlu0 %84
    %86 = vrot.lane.b32.xlu0 %v81, 1
    %v87 = vpop.permute.xlu0 %86
    %88 = vrot.lane.b32.xlu0 %v80, 1
    %v89 = vpop.permute.xlu0 %88
    %90 = vrot.lane.b32.xlu0 %v83, 1
    %v91 = vpop.permute.xlu0 %90
    %vm92 = vcmp.lt.s32.totalorder %v28, 1
    %v93 = vsel %vm92, %v85, %v89
    %v94 = vsel %vm92, %v87, %v91
    %v95 = vsel %vm92, %v89, %v85
    %v96 = vsel %vm92, %v91, %v87
    %v97 = vmul.f32 %v95, %v64
    %v98 = vmul.f32 %v93, %v65
    %v99 = vmul.f32 %v96, %v64
    %v100 = vmul.f32 %v94, %v65
    %101 = vrot.lane.b32.xlu0 %v78, 127
    %v102 = vpop.permute.xlu0 %101
    %103 = vrot.lane.b32.xlu0 %v81, 127
    %v104 = vpop.permute.xlu0 %103
    %105 = vrot.lane.b32.xlu0 %v80, 127
    %v106 = vpop.permute.xlu0 %105
    %107 = vrot.lane.b32.xlu0 %v83, 127
    %v108 = vpop.permute.xlu0 %107
    %vm109 = vcmp.lt.s32.totalorder %v28, 127
    %v110 = vsel %vm109, %v102, %v106
    %v111 = vsel %vm109, %v104, %v108
    %v112 = vsel %vm109, %v106, %v102
    %v113 = vsel %vm109, %v108, %v104
    %v114 = vmul.f32 %v110, %v76
    %v115 = vmul.f32 %v112, %v77
    %v116 = vmul.f32 %v111, %v76
    %v117 = vmul.f32 %v113, %v77
    %v118 = vld [vmem:[%s2] sm:$0xff]
    %v119 = vld [vmem:[%s2 + $0x8] sm:$0xff]
    %v120 = vld [vmem:[%s2 + $0x10] sm:$0xff]
    %v121 = vld [vmem:[%s2 + $0x18] sm:$0xff]
    %vm122 = vcmask 392192
    %v124 = vsel %vm122, %v118, 0
    %v127 = vsel %vm122, %v119, 0
    %v130 = vsel %vm122, %v120, 0
    %v133 = vsel %vm122, %v121, 0
    %135 = vmatprep.subr.mxu0 0.0
    %136 = vmatpush1.msra.mxu0 0.0
    %137 = vmatprep.subr.mxu0 0.0
    %138 = vmatpush1.msra.mxu0 0.0
    %139 = vmatprep.subr.mxu0 0.0
    %140 = vmatpush1.msra.mxu0 0.0
    %141 = vmatprep.subr.mxu0 0.0
    %142 = vmatpush1.msra.mxu0 0.0
    %143 = vmatprep.subr.mxu0 0.0
    %144 = vmatpush1.msra.mxu0 0.0
    %145 = vmatprep.subr.mxu0 0.0
    %146 = vmatpush1.msra.mxu0 0.0
    %147 = vmatprep.subr.mxu0 0.0
    %148 = vmatpush1.msra.mxu0 0.0
    %149 = vmatprep.subr.mxu0 0.0
    %150 = vmatpush1.msra.mxu0 0.0
    %151 = vmatprep.subr.mxu0 0.0
    %152 = vmatpush1.msra.mxu0 0.0
    %153 = vmatprep.subr.mxu0 0.0
    %154 = vmatpush1.msra.mxu0 0.0
    %155 = vmatprep.subr.mxu0 %v117
    %156 = vmatpush1.msra.mxu0 %v116
    %157 = vmatprep.subr.mxu0 %v115
    %158 = vmatpush1.msra.mxu0 %v114
    %159 = vmatprep.subr.mxu0 %v83
    %160 = vmatpush1.msra.mxu0 %v81
    %161 = vmatprep.subr.mxu0 %v80
    %162 = vmatpush1.msra.mxu0 %v78
    %163 = vmatprep.subr.mxu0 %v100
    %164 = vmatpush1.msra.mxu0 %v99
    %165 = vmatprep.subr.mxu0 %v98
    %166 = vmatpush1.msra.mxu0 %v97
    %167 = vmatprep.subr.mxu0 0.0
    %168 = vmatpush2.msra.mxu0 0.0
    %169 = vmatprep.subr.mxu0 0.0
    %170 = vmatpush2.msra.mxu0 0.0
    %171 = vmatprep.subr.mxu0 0.0
    %172 = vmatpush2.msra.mxu0 0.0
    %173 = vmatprep.subr.mxu0 0.0
    %174 = vmatpush2.msra.mxu0 0.0
    %175 = vmatprep.subr.mxu0 0.0
    %176 = vmatpush2.msra.mxu0 0.0
    %177 = vmatprep.subr.mxu0 0.0
    %178 = vmatpush2.msra.mxu0 0.0
    %179 = vmatprep.subr.mxu0 0.0
    %180 = vmatpush2.msra.mxu0 0.0
    %181 = vmatprep.subr.mxu0 0.0
    %182 = vmatpush2.msra.mxu0 0.0
    %183 = vmatprep.subr.mxu0 0.0
    %184 = vmatpush2.msra.mxu0 0.0
    %185 = vmatprep.subr.mxu0 0.0
    %186 = vmatpush2.msra.mxu0 0.0
    %187 = vmatprep.subr.mxu0 0.0
    %188 = vmatpush2.msra.mxu0 0.0
    %189 = vmatprep.subr.mxu0 0.0
    %190 = vmatpush2.msra.mxu0 0.0
    %191 = vmatprep.subr.mxu0 0.0
    %192 = vmatpush2.msra.mxu0 0.0
    %193 = vmatprep.subr.mxu0 0.0
    %194 = vmatpush2.msra.mxu0 0.0
    %195 = vmatprep.subr.mxu0 0.0
    %196 = vmatpush2.msra.mxu0 0.0
    %197 = vmatprep.subr.mxu0 0.0
    %198 = vmatpush2.msra.mxu0 0.0
    %199 = vmatprep.mubr.f32.mxu0 0.0
    %200 = vmatmul.mubr.f32.gmra.mxu0 %v124
    %v201 = vpop.f32.mrf.mxu0
    %v202 = vadd.f32 0.0, %v201
    %v203 = vpop.f32.mrf.mxu0
    %v204 = vadd.f32 0.0, %v203
    %205 = vmatprep.mubr.f32.mxu0 0.0
    %206 = vmatmul.mubr.f32.gmra.mxu0 %v127
    %v207 = vpop.f32.mrf.mxu0
    %v208 = vadd.f32 0.0, %v207
    %v209 = vpop.f32.mrf.mxu0
    %v210 = vadd.f32 0.0, %v209
    %211 = vmatprep.mubr.f32.mxu0 0.0
    %212 = vmatmul.mubr.f32.gmra.mxu0 %v130
    %v213 = vpop.f32.mrf.mxu0
    %v214 = vadd.f32 0.0, %v213
    %v215 = vpop.f32.mrf.mxu0
    %v216 = vadd.f32 0.0, %v215
    %217 = vmatprep.mubr.f32.mxu0 0.0
    %218 = vmatmul.mubr.f32.gmra.mxu0 %v133
    %v219 = vpop.f32.mrf.mxu0
    %v220 = vadd.f32 0.0, %v219
    %v221 = vpop.f32.mrf.mxu0
    %v222 = vadd.f32 0.0, %v221
    %223 = vdwg.mxu0
    %v224 = vmul.f32 %v202, %v202
    %v225 = vmul.f32 %v204, %v204
    %v226 = vmul.f32 %v208, %v208
    %v227 = vmul.f32 %v210, %v210
    %v228 = vmul.f32 %v214, %v214
    %v229 = vmul.f32 %v216, %v216
    %v230 = vmul.f32 %v220, %v220
    %v231 = vmul.f32 %v222, %v222
    %v232 = vmul.f32 %v202, %v214
    %v233 = vmul.f32 %v204, %v216
    %v234 = vmul.f32 %v208, %v220
    %v235 = vmul.f32 %v210, %v222
    %236 = vmatprep.subr.mxu0 0.0
    %237 = vmatpush1.msra.mxu0 1.0
    %238 = vmatprep.subr.mxu0 0.0
    %239 = vmatpush1.msra.mxu0 1.0
    %240 = vmatprep.subr.mxu0 0.0
    %241 = vmatpush1.msra.mxu0 1.0
    %242 = vmatprep.subr.mxu0 0.0
    %243 = vmatpush1.msra.mxu0 1.0
    %244 = vmatprep.subr.mxu0 0.0
    %245 = vmatpush1.msra.mxu0 1.0
    %246 = vmatprep.subr.mxu0 0.0
    %247 = vmatpush1.msra.mxu0 1.0
    %248 = vmatprep.subr.mxu0 0.0
    %249 = vmatpush1.msra.mxu0 1.0
    %250 = vmatprep.subr.mxu0 0.0
    %251 = vmatpush1.msra.mxu0 1.0
    %252 = vmatprep.subr.mxu0 0.0
    %253 = vmatpush1.msra.mxu0 1.0
    %254 = vmatprep.subr.mxu0 0.0
    %255 = vmatpush1.msra.mxu0 1.0
    %256 = vmatprep.subr.mxu0 0.0
    %257 = vmatpush1.msra.mxu0 1.0
    %258 = vmatprep.subr.mxu0 0.0
    %259 = vmatpush1.msra.mxu0 1.0
    %260 = vmatprep.subr.mxu0 0.0
    %261 = vmatpush1.msra.mxu0 1.0
    %262 = vmatprep.subr.mxu0 0.0
    %263 = vmatpush1.msra.mxu0 1.0
    %264 = vmatprep.subr.mxu0 0.0
    %265 = vmatpush1.msra.mxu0 1.0
    %266 = vmatprep.subr.mxu0 0.0
    %267 = vmatpush1.msra.mxu0 1.0
    %268 = vmatprep.subr.mxu0 0.0
    %269 = vmatpush2.msra.mxu0 1.0
    %270 = vmatprep.subr.mxu0 0.0
    %271 = vmatpush2.msra.mxu0 1.0
    %272 = vmatprep.subr.mxu0 0.0
    %273 = vmatpush2.msra.mxu0 1.0
    %274 = vmatprep.subr.mxu0 0.0
    %275 = vmatpush2.msra.mxu0 1.0
    %276 = vmatprep.subr.mxu0 0.0
    %277 = vmatpush2.msra.mxu0 1.0
    %278 = vmatprep.subr.mxu0 0.0
    %279 = vmatpush2.msra.mxu0 1.0
    %280 = vmatprep.subr.mxu0 0.0
    %281 = vmatpush2.msra.mxu0 1.0
    %282 = vmatprep.subr.mxu0 0.0
    %283 = vmatpush2.msra.mxu0 1.0
    %284 = vmatprep.subr.mxu0 0.0
    %285 = vmatpush2.msra.mxu0 1.0
    %286 = vmatprep.subr.mxu0 0.0
    %287 = vmatpush2.msra.mxu0 1.0
    %288 = vmatprep.subr.mxu0 0.0
    %289 = vmatpush2.msra.mxu0 1.0
    %290 = vmatprep.subr.mxu0 0.0
    %291 = vmatpush2.msra.mxu0 1.0
    %292 = vmatprep.subr.mxu0 0.0
    %293 = vmatpush2.msra.mxu0 1.0
    %294 = vmatprep.subr.mxu0 0.0
    %295 = vmatpush2.msra.mxu0 1.0
    %296 = vmatprep.subr.mxu0 0.0
    %297 = vmatpush2.msra.mxu0 1.0
    %298 = vmatprep.subr.mxu0 0.0
    %299 = vmatpush2.msra.mxu0 1.0
    %300 = vmatprep.mubr.f32.mxu0 %v204
    %301 = vmatmul.mubr.f32.gmra.mxu0 %v202
    %v302 = vpop.f32.mrf.mxu0
    %v303 = vadd.f32 0.0, %v302
    %v304 = vpop.f32.mrf.mxu0
    %305 = vmatprep.mubr.f32.mxu0 %v210
    %306 = vmatmul.mubr.f32.gmra.mxu0 %v208
    %v307 = vpop.f32.mrf.mxu0
    %v308 = vadd.f32 0.0, %v307
    %v309 = vpop.f32.mrf.mxu0
    %310 = vmatprep.mubr.f32.mxu0 %v216
    %311 = vmatmul.mubr.f32.gmra.mxu0 %v214
    %v312 = vpop.f32.mrf.mxu0
    %v313 = vadd.f32 0.0, %v312
    %v314 = vpop.f32.mrf.mxu0
    %315 = vmatprep.mubr.f32.mxu0 %v222
    %316 = vmatmul.mubr.f32.gmra.mxu0 %v220
    %v317 = vpop.f32.mrf.mxu0
    %v318 = vadd.f32 0.0, %v317
    %v319 = vpop.f32.mrf.mxu0
    %320 = vmatprep.mubr.f32.mxu0 %v225
    %321 = vmatmul.mubr.f32.gmra.mxu0 %v224
    %v322 = vpop.f32.mrf.mxu0
    %v323 = vadd.f32 0.0, %v322
    %v324 = vpop.f32.mrf.mxu0
    %325 = vmatprep.mubr.f32.mxu0 %v227
    %326 = vmatmul.mubr.f32.gmra.mxu0 %v226
    %v327 = vpop.f32.mrf.mxu0
    %v328 = vadd.f32 0.0, %v327
    %v329 = vpop.f32.mrf.mxu0
    %330 = vmatprep.mubr.f32.mxu0 %v229
    %331 = vmatmul.mubr.f32.gmra.mxu0 %v228
    %v332 = vpop.f32.mrf.mxu0
    %v333 = vadd.f32 0.0, %v332
    %v334 = vpop.f32.mrf.mxu0
    %335 = vmatprep.mubr.f32.mxu0 %v231
    %336 = vmatmul.mubr.f32.gmra.mxu0 %v230
    %v337 = vpop.f32.mrf.mxu0
    %v338 = vadd.f32 0.0, %v337
    %v339 = vpop.f32.mrf.mxu0
    %340 = vmatprep.mubr.f32.mxu0 %v233
    %341 = vmatmul.mubr.f32.gmra.mxu0 %v232
    %v342 = vpop.f32.mrf.mxu0
    %v343 = vadd.f32 0.0, %v342
    %v344 = vpop.f32.mrf.mxu0
    %345 = vmatprep.mubr.f32.mxu0 %v235
    %346 = vmatmul.mubr.f32.gmra.mxu0 %v234
    %v347 = vpop.f32.mrf.mxu0
    %v348 = vadd.f32 0.0, %v347
    %v349 = vpop.f32.mrf.mxu0
    %350 = vdwg.mxu0
    %v351 = vmul.f32 %v303, 0.00390625
    %v352 = vmul.f32 %v308, 0.00390625
    %v353 = vmul.f32 %v313, 0.00390625
    %v354 = vmul.f32 %v318, 0.00390625
    %v355 = vmul.f32 %v323, 0.00390625
    %v356 = vmul.f32 %v328, 0.00390625
    %v357 = vmul.f32 %v333, 0.00390625
    %v358 = vmul.f32 %v338, 0.00390625
    %v359 = vmul.f32 %v343, 0.00390625
    %v360 = vmul.f32 %v348, 0.00390625
    %v361 = vmul.f32 %v351, %v351
    %v362 = vmul.f32 %v352, %v352
    %v363 = vsub.f32 %v355, %v361
    %v364 = vsub.f32 %v356, %v362
    %v365 = vadd.f32 %v363, 1e-05
    %v366 = vadd.f32 %v364, 1e-05
    %v367 = vmul.f32 %v353, %v353
    %v368 = vmul.f32 %v354, %v354
    %v369 = vsub.f32 %v357, %v367
    %v370 = vsub.f32 %v358, %v368
    %v371 = vadd.f32 %v369, 1e-05
    %v372 = vadd.f32 %v370, 1e-05
    %v373 = vmul.f32 %v351, %v353
    %v374 = vmul.f32 %v352, %v354
    %v375 = vsub.f32 %v359, %v373
    %v376 = vsub.f32 %v360, %v374
    %v377 = vmul.f32 %v365, %v371
    %v378 = vmul.f32 %v366, %v372
    %v379 = vmul.f32 %v375, %v375
    %v380 = vmul.f32 %v376, %v376
    %v381 = vsub.f32 %v377, %v379
    %v382 = vsub.f32 %v378, %v380
    %v383 = vrsqrt.pop %v381
    %v384 = vmul.f32 %v381, %v383
    %vm385 = vcmp.eq.f32.partialorder %v381, inf
    %v386 = vsel %vm385, %v381, %v384
    %vm387 = vcmp.eq.f32.partialorder %v381, 0.0
    %v388 = vand.u32 %v381, 2147483648
    %v389 = vsel %vm387, %v388, %v386
    %v390 = vrsqrt.pop %v382
    %v391 = vmul.f32 %v382, %v390
    %vm392 = vcmp.eq.f32.partialorder %v382, inf
    %v393 = vsel %vm392, %v382, %v391
    %vm394 = vcmp.eq.f32.partialorder %v382, 0.0
    %v395 = vand.u32 %v382, 2147483648
    %v396 = vsel %vm394, %v395, %v393
    %v397 = vrsqrt.pop %v381
    %v398 = vrsqrt.pop %v382
    %v399 = vadd.f32 %v365, %v371
    %v400 = vadd.f32 %v366, %v372
    %v401 = vmul.f32 %v389, 2.0
    %v402 = vmul.f32 %v396, 2.0
    %v403 = vadd.f32 %v399, %v401
    %v404 = vadd.f32 %v400, %v402
    %v405 = vrsqrt.pop %v403
    %v406 = vrsqrt.pop %v404
    %v407 = vmul.f32 %v397, %v405
    %v408 = vmul.f32 %v398, %v406
    %v409 = vadd.f32 %v371, %v389
    %v410 = vadd.f32 %v372, %v396
    %v411 = vmul.f32 %v409, %v407
    %v412 = vmul.f32 %v410, %v408
    %v413 = vadd.f32 %v365, %v389
    %v414 = vadd.f32 %v366, %v396
    %v415 = vmul.f32 %v413, %v407
    %v416 = vmul.f32 %v414, %v408
    %v417 = vsub.f32 0.0, %v375
    %v418 = vsub.f32 0.0, %v376
    %v419 = vmul.f32 %v417, %v407
    %v420 = vmul.f32 %v418, %v408
    %v421 = vld [vmem:[%s3] sm:$0xff]
    %v422 = vld [vmem:[%s3 + $0x8] sm:$0xff]
    %s423 = scalar_lea.vmem %s3, 16
    %v424 = vld [vmem:[%s423] sm:$0xff]
    %v425 = vld [vmem:[%s423 + $0x8] sm:$0xff]
    %s426 = scalar_lea.vmem %s3, 32
    %v427 = vld [vmem:[%s426] sm:$0xff]
    %v428 = vld [vmem:[%s426 + $0x8] sm:$0xff]
    %s429 = scalar_lea.vmem %s3, 48
    %v430 = vld [vmem:[%s429] sm:$0xff]
    %v431 = vld [vmem:[%s429 + $0x8] sm:$0xff]
    %s432 = scalar_lea.vmem %s3, 64
    %v433 = vld [vmem:[%s432] sm:$0xff]
    %v434 = vld [vmem:[%s432 + $0x8] sm:$0xff]
    %v435 = vmul.f32 %v421, %v411
    %v436 = vmul.f32 %v422, %v412
    %v437 = vmul.f32 %v427, %v419
    %v438 = vmul.f32 %v428, %v420
    %v439 = vadd.f32 %v435, %v437
    %v440 = vadd.f32 %v436, %v438
    %v441 = vmul.f32 %v421, %v419
    %v442 = vmul.f32 %v422, %v420
    %v443 = vmul.f32 %v427, %v415
    %v444 = vmul.f32 %v428, %v416
    %v445 = vadd.f32 %v441, %v443
    %v446 = vadd.f32 %v442, %v444
    %v447 = vmul.f32 %v427, %v411
    %v448 = vmul.f32 %v428, %v412
    %v449 = vmul.f32 %v424, %v419
    %v450 = vmul.f32 %v425, %v420
    %v451 = vadd.f32 %v447, %v449
    %v452 = vadd.f32 %v448, %v450
    %v453 = vmul.f32 %v424, %v415
    %v454 = vmul.f32 %v425, %v416
    %v455 = vadd.f32 %v437, %v453
    %v456 = vadd.f32 %v438, %v454
    %v457 = vmul.f32 %v439, %v351
    %v458 = vmul.f32 %v440, %v352
    %v459 = vmul.f32 %v445, %v353
    %v460 = vmul.f32 %v446, %v354
    %v461 = vadd.f32 %v457, %v459
    %v462 = vadd.f32 %v458, %v460
    %v463 = vsub.f32 %v430, %v461
    %v464 = vsub.f32 %v431, %v462
    %v465 = vmul.f32 %v451, %v351
    %v466 = vmul.f32 %v452, %v352
    %v467 = vmul.f32 %v455, %v353
    %v468 = vmul.f32 %v456, %v354
    %v469 = vadd.f32 %v465, %v467
    %v470 = vadd.f32 %v466, %v468
    %v471 = vsub.f32 %v433, %v469
    %v472 = vsub.f32 %v434, %v470
    %474 = vset.pattern.permute.xlu0 0
    %475 = vperm.xlu0 %474, %v439
    %v476 = vpop.permute.xlu0 %475
    %479 = vset.pattern.permute.xlu0 0
    %480 = vperm.xlu0 %479, %v440
    %v481 = vpop.permute.xlu0 %480
    %v483 = vmul.f32 %v476, %v202
    %v484 = vmul.f32 %v476, %v204
    %v485 = vmul.f32 %v481, %v208
    %v486 = vmul.f32 %v481, %v210
    %488 = vset.pattern.permute.xlu0 0
    %489 = vperm.xlu0 %488, %v445
    %v490 = vpop.permute.xlu0 %489
    %493 = vset.pattern.permute.xlu0 0
    %494 = vperm.xlu0 %493, %v446
    %v495 = vpop.permute.xlu0 %494
    %v497 = vmul.f32 %v490, %v214
    %v498 = vmul.f32 %v490, %v216
    %v499 = vmul.f32 %v495, %v220
    %v500 = vmul.f32 %v495, %v222
    %v501 = vadd.f32 %v483, %v497
    %v502 = vadd.f32 %v484, %v498
    %v503 = vadd.f32 %v485, %v499
    %v504 = vadd.f32 %v486, %v500
    %506 = vset.pattern.permute.xlu0 0
    %507 = vperm.xlu0 %506, %v463
    %v508 = vpop.permute.xlu0 %507
    %511 = vset.pattern.permute.xlu0 0
    %512 = vperm.xlu0 %511, %v464
    %v513 = vpop.permute.xlu0 %512
    %v515 = vadd.f32 %v501, %v508
    %v516 = vadd.f32 %v502, %v508
    %v517 = vadd.f32 %v503, %v513
    %v518 = vadd.f32 %v504, %v513
    %v519 = vmax.f32 %v515, 0.0
    %v520 = vmax.f32 %v516, 0.0
    %v521 = vmax.f32 %v517, 0.0
    %v522 = vmax.f32 %v518, 0.0
    %524 = vset.pattern.permute.xlu0 0
    %525 = vperm.xlu0 %524, %v451
    %v526 = vpop.permute.xlu0 %525
    %529 = vset.pattern.permute.xlu0 0
    %530 = vperm.xlu0 %529, %v452
    %v531 = vpop.permute.xlu0 %530
    %v533 = vmul.f32 %v526, %v202
    %v534 = vmul.f32 %v526, %v204
    %v535 = vmul.f32 %v531, %v208
    %v536 = vmul.f32 %v531, %v210
    %538 = vset.pattern.permute.xlu0 0
    %539 = vperm.xlu0 %538, %v455
    %v540 = vpop.permute.xlu0 %539
    %543 = vset.pattern.permute.xlu0 0
    %544 = vperm.xlu0 %543, %v456
    %v545 = vpop.permute.xlu0 %544
    %v547 = vmul.f32 %v540, %v214
    %v548 = vmul.f32 %v540, %v216
    %v549 = vmul.f32 %v545, %v220
    %v550 = vmul.f32 %v545, %v222
    %v551 = vadd.f32 %v533, %v547
    %v552 = vadd.f32 %v534, %v548
    %v553 = vadd.f32 %v535, %v549
    %v554 = vadd.f32 %v536, %v550
    %556 = vset.pattern.permute.xlu0 0
    %557 = vperm.xlu0 %556, %v471
    %v558 = vpop.permute.xlu0 %557
    %561 = vset.pattern.permute.xlu0 0
    %562 = vperm.xlu0 %561, %v472
    %v563 = vpop.permute.xlu0 %562
    %v565 = vadd.f32 %v551, %v558
    %v566 = vadd.f32 %v552, %v558
    %v567 = vadd.f32 %v553, %v563
    %v568 = vadd.f32 %v554, %v563
    %v569 = vmax.f32 %v565, 0.0
    %v570 = vmax.f32 %v566, 0.0
    %v571 = vmax.f32 %v567, 0.0
    %v572 = vmax.f32 %v568, 0.0
    %573 = vrot.lane.b32.xlu0 %v519, 1
    %v574 = vpop.permute.xlu0 %573
    %575 = vrot.lane.b32.xlu0 %v521, 1
    %v576 = vpop.permute.xlu0 %575
    %577 = vrot.lane.b32.xlu0 %v569, 1
    %v578 = vpop.permute.xlu0 %577
    %579 = vrot.lane.b32.xlu0 %v571, 1
    %v580 = vpop.permute.xlu0 %579
    %581 = vrot.lane.b32.xlu0 %v520, 1
    %v582 = vpop.permute.xlu0 %581
    %583 = vrot.lane.b32.xlu0 %v522, 1
    %v584 = vpop.permute.xlu0 %583
    %585 = vrot.lane.b32.xlu0 %v570, 1
    %v586 = vpop.permute.xlu0 %585
    %587 = vrot.lane.b32.xlu0 %v572, 1
    %v588 = vpop.permute.xlu0 %587
    %v589 = vsel %vm92, %v574, %v582
    %v590 = vsel %vm92, %v576, %v584
    %v591 = vsel %vm92, %v578, %v586
    %v592 = vsel %vm92, %v580, %v588
    %v593 = vsel %vm92, %v582, %v574
    %v594 = vsel %vm92, %v584, %v576
    %v595 = vsel %vm92, %v586, %v578
    %v596 = vsel %vm92, %v588, %v580
    %v597 = vmul.f32 %v593, %v64
    %v598 = vmul.f32 %v589, %v65
    %v599 = vmul.f32 %v594, %v64
    %v600 = vmul.f32 %v590, %v65
    %v601 = vmul.f32 %v595, %v64
    %v602 = vmul.f32 %v591, %v65
    %v603 = vmul.f32 %v596, %v64
    %v604 = vmul.f32 %v592, %v65
    %605 = vrot.lane.b32.xlu0 %v519, 127
    %v606 = vpop.permute.xlu0 %605
    %607 = vrot.lane.b32.xlu0 %v521, 127
    %v608 = vpop.permute.xlu0 %607
    %609 = vrot.lane.b32.xlu0 %v569, 127
    %v610 = vpop.permute.xlu0 %609
    %611 = vrot.lane.b32.xlu0 %v571, 127
    %v612 = vpop.permute.xlu0 %611
    %613 = vrot.lane.b32.xlu0 %v520, 127
    %v614 = vpop.permute.xlu0 %613
    %615 = vrot.lane.b32.xlu0 %v522, 127
    %v616 = vpop.permute.xlu0 %615
    %617 = vrot.lane.b32.xlu0 %v570, 127
    %v618 = vpop.permute.xlu0 %617
    %619 = vrot.lane.b32.xlu0 %v572, 127
    %v620 = vpop.permute.xlu0 %619
    %v621 = vsel %vm109, %v606, %v614
    %v622 = vsel %vm109, %v608, %v616
    %v623 = vsel %vm109, %v610, %v618
    %v624 = vsel %vm109, %v612, %v620
    %v625 = vsel %vm109, %v614, %v606
    %v626 = vsel %vm109, %v616, %v608
    %v627 = vsel %vm109, %v618, %v610
    %v628 = vsel %vm109, %v620, %v612
    %v629 = vmul.f32 %v621, %v76
    %v630 = vmul.f32 %v625, %v77
    %v631 = vmul.f32 %v622, %v76
    %v632 = vmul.f32 %v626, %v77
    %v633 = vmul.f32 %v623, %v76
    %v634 = vmul.f32 %v627, %v77
    %v635 = vmul.f32 %v624, %v76
    %v636 = vmul.f32 %v628, %v77
    %v637 = vld [vmem:[%s4] sm:$0xff]
    %v638 = vld [vmem:[%s4 + $0x8] sm:$0xff]
    %v639 = vld [vmem:[%s4 + $0x10] sm:$0xff]
    %v640 = vld [vmem:[%s4 + $0x18] sm:$0xff]
    %vm641 = vcmask 785408
    %v643 = vsel %vm641, %v637, 0
    %v646 = vsel %vm641, %v638, 0
    %v649 = vsel %vm641, %v639, 0
    %v652 = vsel %vm641, %v640, 0
    %654 = vmatprep.subr.mxu0 0.0
    %655 = vmatpush1.msra.mxu0 0.0
    %656 = vmatprep.subr.mxu0 0.0
    %657 = vmatpush1.msra.mxu0 0.0
    %658 = vmatprep.subr.mxu0 0.0
    %659 = vmatpush1.msra.mxu0 0.0
    %660 = vmatprep.subr.mxu0 0.0
    %661 = vmatpush1.msra.mxu0 0.0
    %662 = vmatprep.subr.mxu0 %v636
    %663 = vmatpush1.msra.mxu0 %v635
    %664 = vmatprep.subr.mxu0 %v634
    %665 = vmatpush1.msra.mxu0 %v633
    %666 = vmatprep.subr.mxu0 %v632
    %667 = vmatpush1.msra.mxu0 %v631
    %668 = vmatprep.subr.mxu0 %v630
    %669 = vmatpush1.msra.mxu0 %v629
    %670 = vmatprep.subr.mxu0 %v572
    %671 = vmatpush1.msra.mxu0 %v571
    %672 = vmatprep.subr.mxu0 %v570
    %673 = vmatpush1.msra.mxu0 %v569
    %674 = vmatprep.subr.mxu0 %v522
    %675 = vmatpush1.msra.mxu0 %v521
    %676 = vmatprep.subr.mxu0 %v520
    %677 = vmatpush1.msra.mxu0 %v519
    %678 = vmatprep.subr.mxu0 %v604
    %679 = vmatpush1.msra.mxu0 %v603
    %680 = vmatprep.subr.mxu0 %v602
    %681 = vmatpush1.msra.mxu0 %v601
    %682 = vmatprep.subr.mxu0 %v600
    %683 = vmatpush1.msra.mxu0 %v599
    %684 = vmatprep.subr.mxu0 %v598
    %685 = vmatpush1.msra.mxu0 %v597
    %686 = vmatprep.subr.mxu0 0.0
    %687 = vmatpush2.msra.mxu0 0.0
    %688 = vmatprep.subr.mxu0 0.0
    %689 = vmatpush2.msra.mxu0 0.0
    %690 = vmatprep.subr.mxu0 0.0
    %691 = vmatpush2.msra.mxu0 0.0
    %692 = vmatprep.subr.mxu0 0.0
    %693 = vmatpush2.msra.mxu0 0.0
    %694 = vmatprep.subr.mxu0 0.0
    %695 = vmatpush2.msra.mxu0 0.0
    %696 = vmatprep.subr.mxu0 0.0
    %697 = vmatpush2.msra.mxu0 0.0
    %698 = vmatprep.subr.mxu0 0.0
    %699 = vmatpush2.msra.mxu0 0.0
    %700 = vmatprep.subr.mxu0 0.0
    %701 = vmatpush2.msra.mxu0 0.0
    %702 = vmatprep.subr.mxu0 0.0
    %703 = vmatpush2.msra.mxu0 0.0
    %704 = vmatprep.subr.mxu0 0.0
    %705 = vmatpush2.msra.mxu0 0.0
    %706 = vmatprep.subr.mxu0 0.0
    %707 = vmatpush2.msra.mxu0 0.0
    %708 = vmatprep.subr.mxu0 0.0
    %709 = vmatpush2.msra.mxu0 0.0
    %710 = vmatprep.subr.mxu0 0.0
    %711 = vmatpush2.msra.mxu0 0.0
    %712 = vmatprep.subr.mxu0 0.0
    %713 = vmatpush2.msra.mxu0 0.0
    %714 = vmatprep.subr.mxu0 0.0
    %715 = vmatpush2.msra.mxu0 0.0
    %716 = vmatprep.subr.mxu0 0.0
    %717 = vmatpush2.msra.mxu0 0.0
    %718 = vmatprep.mubr.f32.mxu0 0.0
    %719 = vmatmul.mubr.f32.gmra.mxu0 %v643
    %v720 = vpop.f32.mrf.mxu0
    %v721 = vadd.f32 0.0, %v720
    %v722 = vpop.f32.mrf.mxu0
    %v723 = vadd.f32 0.0, %v722
    %724 = vmatprep.mubr.f32.mxu0 0.0
    %725 = vmatmul.mubr.f32.gmra.mxu0 %v646
    %v726 = vpop.f32.mrf.mxu0
    %v727 = vadd.f32 0.0, %v726
    %v728 = vpop.f32.mrf.mxu0
    %v729 = vadd.f32 0.0, %v728
    %730 = vmatprep.mubr.f32.mxu0 0.0
    %731 = vmatmul.mubr.f32.gmra.mxu0 %v649
    %v732 = vpop.f32.mrf.mxu0
    %v733 = vadd.f32 0.0, %v732
    %v734 = vpop.f32.mrf.mxu0
    %v735 = vadd.f32 0.0, %v734
    %736 = vmatprep.mubr.f32.mxu0 0.0
    %737 = vmatmul.mubr.f32.gmra.mxu0 %v652
    %v738 = vpop.f32.mrf.mxu0
    %v739 = vadd.f32 0.0, %v738
    %v740 = vpop.f32.mrf.mxu0
    %v741 = vadd.f32 0.0, %v740
    %742 = vdwg.mxu0
    %v743 = vmul.f32 %v721, %v721
    %v744 = vmul.f32 %v723, %v723
    %v745 = vmul.f32 %v727, %v727
    %v746 = vmul.f32 %v729, %v729
    %v747 = vmul.f32 %v733, %v733
    %v748 = vmul.f32 %v735, %v735
    %v749 = vmul.f32 %v739, %v739
    %v750 = vmul.f32 %v741, %v741
    %v751 = vmul.f32 %v721, %v733
    %v752 = vmul.f32 %v723, %v735
    %v753 = vmul.f32 %v727, %v739
    %v754 = vmul.f32 %v729, %v741
    %755 = vmatprep.subr.mxu0 0.0
    %756 = vmatpush1.msra.mxu0 1.0
    %757 = vmatprep.subr.mxu0 0.0
    %758 = vmatpush1.msra.mxu0 1.0
    %759 = vmatprep.subr.mxu0 0.0
    %760 = vmatpush1.msra.mxu0 1.0
    %761 = vmatprep.subr.mxu0 0.0
    %762 = vmatpush1.msra.mxu0 1.0
    %763 = vmatprep.subr.mxu0 0.0
    %764 = vmatpush1.msra.mxu0 1.0
    %765 = vmatprep.subr.mxu0 0.0
    %766 = vmatpush1.msra.mxu0 1.0
    %767 = vmatprep.subr.mxu0 0.0
    %768 = vmatpush1.msra.mxu0 1.0
    %769 = vmatprep.subr.mxu0 0.0
    %770 = vmatpush1.msra.mxu0 1.0
    %771 = vmatprep.subr.mxu0 0.0
    %772 = vmatpush1.msra.mxu0 1.0
    %773 = vmatprep.subr.mxu0 0.0
    %774 = vmatpush1.msra.mxu0 1.0
    %775 = vmatprep.subr.mxu0 0.0
    %776 = vmatpush1.msra.mxu0 1.0
    %777 = vmatprep.subr.mxu0 0.0
    %778 = vmatpush1.msra.mxu0 1.0
    %779 = vmatprep.subr.mxu0 0.0
    %780 = vmatpush1.msra.mxu0 1.0
    %781 = vmatprep.subr.mxu0 0.0
    %782 = vmatpush1.msra.mxu0 1.0
    %783 = vmatprep.subr.mxu0 0.0
    %784 = vmatpush1.msra.mxu0 1.0
    %785 = vmatprep.subr.mxu0 0.0
    %786 = vmatpush1.msra.mxu0 1.0
    %787 = vmatprep.subr.mxu0 0.0
    %788 = vmatpush2.msra.mxu0 1.0
    %789 = vmatprep.subr.mxu0 0.0
    %790 = vmatpush2.msra.mxu0 1.0
    %791 = vmatprep.subr.mxu0 0.0
    %792 = vmatpush2.msra.mxu0 1.0
    %793 = vmatprep.subr.mxu0 0.0
    %794 = vmatpush2.msra.mxu0 1.0
    %795 = vmatprep.subr.mxu0 0.0
    %796 = vmatpush2.msra.mxu0 1.0
    %797 = vmatprep.subr.mxu0 0.0
    %798 = vmatpush2.msra.mxu0 1.0
    %799 = vmatprep.subr.mxu0 0.0
    %800 = vmatpush2.msra.mxu0 1.0
    %801 = vmatprep.subr.mxu0 0.0
    %802 = vmatpush2.msra.mxu0 1.0
    %803 = vmatprep.subr.mxu0 0.0
    %804 = vmatpush2.msra.mxu0 1.0
    %805 = vmatprep.subr.mxu0 0.0
    %806 = vmatpush2.msra.mxu0 1.0
    %807 = vmatprep.subr.mxu0 0.0
    %808 = vmatpush2.msra.mxu0 1.0
    %809 = vmatprep.subr.mxu0 0.0
    %810 = vmatpush2.msra.mxu0 1.0
    %811 = vmatprep.subr.mxu0 0.0
    %812 = vmatpush2.msra.mxu0 1.0
    %813 = vmatprep.subr.mxu0 0.0
    %814 = vmatpush2.msra.mxu0 1.0
    %815 = vmatprep.subr.mxu0 0.0
    %816 = vmatpush2.msra.mxu0 1.0
    %817 = vmatprep.subr.mxu0 0.0
    %818 = vmatpush2.msra.mxu0 1.0
    %819 = vmatprep.mubr.f32.mxu0 %v723
    %820 = vmatmul.mubr.f32.gmra.mxu0 %v721
    %v821 = vpop.f32.mrf.mxu0
    %v822 = vadd.f32 0.0, %v821
    %v823 = vpop.f32.mrf.mxu0
    %824 = vmatprep.mubr.f32.mxu0 %v729
    %825 = vmatmul.mubr.f32.gmra.mxu0 %v727
    %v826 = vpop.f32.mrf.mxu0
    %v827 = vadd.f32 0.0, %v826
    %v828 = vpop.f32.mrf.mxu0
    %829 = vmatprep.mubr.f32.mxu0 %v735
    %830 = vmatmul.mubr.f32.gmra.mxu0 %v733
    %v831 = vpop.f32.mrf.mxu0
    %v832 = vadd.f32 0.0, %v831
    %v833 = vpop.f32.mrf.mxu0
    %834 = vmatprep.mubr.f32.mxu0 %v741
    %835 = vmatmul.mubr.f32.gmra.mxu0 %v739
    %v836 = vpop.f32.mrf.mxu0
    %v837 = vadd.f32 0.0, %v836
    %v838 = vpop.f32.mrf.mxu0
    %839 = vmatprep.mubr.f32.mxu0 %v744
    %840 = vmatmul.mubr.f32.gmra.mxu0 %v743
    %v841 = vpop.f32.mrf.mxu0
    %v842 = vadd.f32 0.0, %v841
    %v843 = vpop.f32.mrf.mxu0
    %844 = vmatprep.mubr.f32.mxu0 %v746
    %845 = vmatmul.mubr.f32.gmra.mxu0 %v745
    %v846 = vpop.f32.mrf.mxu0
    %v847 = vadd.f32 0.0, %v846
    %v848 = vpop.f32.mrf.mxu0
    %849 = vmatprep.mubr.f32.mxu0 %v748
    %850 = vmatmul.mubr.f32.gmra.mxu0 %v747
    %v851 = vpop.f32.mrf.mxu0
    %v852 = vadd.f32 0.0, %v851
    %v853 = vpop.f32.mrf.mxu0
    %854 = vmatprep.mubr.f32.mxu0 %v750
    %855 = vmatmul.mubr.f32.gmra.mxu0 %v749
    %v856 = vpop.f32.mrf.mxu0
    %v857 = vadd.f32 0.0, %v856
    %v858 = vpop.f32.mrf.mxu0
    %859 = vmatprep.mubr.f32.mxu0 %v752
    %860 = vmatmul.mubr.f32.gmra.mxu0 %v751
    %v861 = vpop.f32.mrf.mxu0
    %v862 = vadd.f32 0.0, %v861
    %v863 = vpop.f32.mrf.mxu0
    %864 = vmatprep.mubr.f32.mxu0 %v754
    %865 = vmatmul.mubr.f32.gmra.mxu0 %v753
    %v866 = vpop.f32.mrf.mxu0
    %v867 = vadd.f32 0.0, %v866
    %v868 = vpop.f32.mrf.mxu0
    %869 = vdwg.mxu0
    %v870 = vmul.f32 %v822, 0.00390625
    %v871 = vmul.f32 %v827, 0.00390625
    %v872 = vmul.f32 %v832, 0.00390625
    %v873 = vmul.f32 %v837, 0.00390625
    %v874 = vmul.f32 %v842, 0.00390625
    %v875 = vmul.f32 %v847, 0.00390625
    %v876 = vmul.f32 %v852, 0.00390625
    %v877 = vmul.f32 %v857, 0.00390625
    %v878 = vmul.f32 %v862, 0.00390625
    %v879 = vmul.f32 %v867, 0.00390625
    %v880 = vmul.f32 %v870, %v870
    %v881 = vmul.f32 %v871, %v871
    %v882 = vsub.f32 %v874, %v880
    %v883 = vsub.f32 %v875, %v881
    %v884 = vadd.f32 %v882, 1e-05
    %v885 = vadd.f32 %v883, 1e-05
    %v886 = vmul.f32 %v872, %v872
    %v887 = vmul.f32 %v873, %v873
    %v888 = vsub.f32 %v876, %v886
    %v889 = vsub.f32 %v877, %v887
    %v890 = vadd.f32 %v888, 1e-05
    %v891 = vadd.f32 %v889, 1e-05
    %v892 = vmul.f32 %v870, %v872
    %v893 = vmul.f32 %v871, %v873
    %v894 = vsub.f32 %v878, %v892
    %v895 = vsub.f32 %v879, %v893
    %v896 = vmul.f32 %v884, %v890
    %v897 = vmul.f32 %v885, %v891
    %v898 = vmul.f32 %v894, %v894
    %v899 = vmul.f32 %v895, %v895
    %v900 = vsub.f32 %v896, %v898
    %v901 = vsub.f32 %v897, %v899
    %v902 = vrsqrt.pop %v900
    %v903 = vmul.f32 %v900, %v902
    %vm904 = vcmp.eq.f32.partialorder %v900, inf
    %v905 = vsel %vm904, %v900, %v903
    %vm906 = vcmp.eq.f32.partialorder %v900, 0.0
    %v907 = vand.u32 %v900, 2147483648
    %v908 = vsel %vm906, %v907, %v905
    %v909 = vrsqrt.pop %v901
    %v910 = vmul.f32 %v901, %v909
    %vm911 = vcmp.eq.f32.partialorder %v901, inf
    %v912 = vsel %vm911, %v901, %v910
    %vm913 = vcmp.eq.f32.partialorder %v901, 0.0
    %v914 = vand.u32 %v901, 2147483648
    %v915 = vsel %vm913, %v914, %v912
    %v916 = vrsqrt.pop %v900
    %v917 = vrsqrt.pop %v901
    %v918 = vadd.f32 %v884, %v890
    %v919 = vadd.f32 %v885, %v891
    %v920 = vmul.f32 %v908, 2.0
    %v921 = vmul.f32 %v915, 2.0
    %v922 = vadd.f32 %v918, %v920
    %v923 = vadd.f32 %v919, %v921
    %v924 = vrsqrt.pop %v922
    %v925 = vrsqrt.pop %v923
    %v926 = vmul.f32 %v916, %v924
    %v927 = vmul.f32 %v917, %v925
    %v928 = vadd.f32 %v890, %v908
    %v929 = vadd.f32 %v891, %v915
    %v930 = vmul.f32 %v928, %v926
    %v931 = vmul.f32 %v929, %v927
    %v932 = vadd.f32 %v884, %v908
    %v933 = vadd.f32 %v885, %v915
    %v934 = vmul.f32 %v932, %v926
    %v935 = vmul.f32 %v933, %v927
    %v936 = vsub.f32 0.0, %v894
    %v937 = vsub.f32 0.0, %v895
    %v938 = vmul.f32 %v936, %v926
    %v939 = vmul.f32 %v937, %v927
    %v940 = vld [vmem:[%s5] sm:$0xff]
    %v941 = vld [vmem:[%s5 + $0x8] sm:$0xff]
    %s942 = scalar_lea.vmem %s5, 16
    %v943 = vld [vmem:[%s942] sm:$0xff]
    %v944 = vld [vmem:[%s942 + $0x8] sm:$0xff]
    %s945 = scalar_lea.vmem %s5, 32
    %v946 = vld [vmem:[%s945] sm:$0xff]
    %v947 = vld [vmem:[%s945 + $0x8] sm:$0xff]
    %s948 = scalar_lea.vmem %s5, 48
    %v949 = vld [vmem:[%s948] sm:$0xff]
    %v950 = vld [vmem:[%s948 + $0x8] sm:$0xff]
    %s951 = scalar_lea.vmem %s5, 64
    %v952 = vld [vmem:[%s951] sm:$0xff]
    %v953 = vld [vmem:[%s951 + $0x8] sm:$0xff]
    %v954 = vmul.f32 %v940, %v930
    %v955 = vmul.f32 %v941, %v931
    %v956 = vmul.f32 %v946, %v938
    %v957 = vmul.f32 %v947, %v939
    %v958 = vadd.f32 %v954, %v956
    %v959 = vadd.f32 %v955, %v957
    %v960 = vmul.f32 %v940, %v938
    %v961 = vmul.f32 %v941, %v939
    %v962 = vmul.f32 %v946, %v934
    %v963 = vmul.f32 %v947, %v935
    %v964 = vadd.f32 %v960, %v962
    %v965 = vadd.f32 %v961, %v963
    %v966 = vmul.f32 %v946, %v930
    %v967 = vmul.f32 %v947, %v931
    %v968 = vmul.f32 %v943, %v938
    %v969 = vmul.f32 %v944, %v939
    %v970 = vadd.f32 %v966, %v968
    %v971 = vadd.f32 %v967, %v969
    %v972 = vmul.f32 %v943, %v934
    %v973 = vmul.f32 %v944, %v935
    %v974 = vadd.f32 %v956, %v972
    %v975 = vadd.f32 %v957, %v973
    %v976 = vmul.f32 %v958, %v870
    %v977 = vmul.f32 %v959, %v871
    %v978 = vmul.f32 %v964, %v872
    %v979 = vmul.f32 %v965, %v873
    %v980 = vadd.f32 %v976, %v978
    %v981 = vadd.f32 %v977, %v979
    %v982 = vsub.f32 %v949, %v980
    %v983 = vsub.f32 %v950, %v981
    %v984 = vmul.f32 %v970, %v870
    %v985 = vmul.f32 %v971, %v871
    %v986 = vmul.f32 %v974, %v872
    %v987 = vmul.f32 %v975, %v873
    %v988 = vadd.f32 %v984, %v986
    %v989 = vadd.f32 %v985, %v987
    %v990 = vsub.f32 %v952, %v988
    %v991 = vsub.f32 %v953, %v989
    %993 = vset.pattern.permute.xlu0 0
    %994 = vperm.xlu0 %993, %v958
    %v995 = vpop.permute.xlu0 %994
    %998 = vset.pattern.permute.xlu0 0
    %999 = vperm.xlu0 %998, %v959
    %v1000 = vpop.permute.xlu0 %999
    %v1002 = vmul.f32 %v995, %v721
    %v1003 = vmul.f32 %v995, %v723
    %v1004 = vmul.f32 %v1000, %v727
    %v1005 = vmul.f32 %v1000, %v729
    %1007 = vset.pattern.permute.xlu0 0
    %1008 = vperm.xlu0 %1007, %v964
    %v1009 = vpop.permute.xlu0 %1008
    %1012 = vset.pattern.permute.xlu0 0
    %1013 = vperm.xlu0 %1012, %v965
    %v1014 = vpop.permute.xlu0 %1013
    %v1016 = vmul.f32 %v1009, %v733
    %v1017 = vmul.f32 %v1009, %v735
    %v1018 = vmul.f32 %v1014, %v739
    %v1019 = vmul.f32 %v1014, %v741
    %v1020 = vadd.f32 %v1002, %v1016
    %v1021 = vadd.f32 %v1003, %v1017
    %v1022 = vadd.f32 %v1004, %v1018
    %v1023 = vadd.f32 %v1005, %v1019
    %1025 = vset.pattern.permute.xlu0 0
    %1026 = vperm.xlu0 %1025, %v982
    %v1027 = vpop.permute.xlu0 %1026
    %1030 = vset.pattern.permute.xlu0 0
    %1031 = vperm.xlu0 %1030, %v983
    %v1032 = vpop.permute.xlu0 %1031
    %v1034 = vadd.f32 %v1020, %v1027
    %v1035 = vadd.f32 %v1021, %v1027
    %v1036 = vadd.f32 %v1022, %v1032
    %v1037 = vadd.f32 %v1023, %v1032
    %v1038 = vmax.f32 %v1034, 0.0
    %v1039 = vmax.f32 %v1035, 0.0
    %v1040 = vmax.f32 %v1036, 0.0
    %v1041 = vmax.f32 %v1037, 0.0
    %1043 = vset.pattern.permute.xlu0 0
    %1044 = vperm.xlu0 %1043, %v970
    %v1045 = vpop.permute.xlu0 %1044
    %1048 = vset.pattern.permute.xlu0 0
    %1049 = vperm.xlu0 %1048, %v971
    %v1050 = vpop.permute.xlu0 %1049
    %v1052 = vmul.f32 %v1045, %v721
    %v1053 = vmul.f32 %v1045, %v723
    %v1054 = vmul.f32 %v1050, %v727
    %v1055 = vmul.f32 %v1050, %v729
    %1057 = vset.pattern.permute.xlu0 0
    %1058 = vperm.xlu0 %1057, %v974
    %v1059 = vpop.permute.xlu0 %1058
    %1062 = vset.pattern.permute.xlu0 0
    %1063 = vperm.xlu0 %1062, %v975
    %v1064 = vpop.permute.xlu0 %1063
    %v1066 = vmul.f32 %v1059, %v733
    %v1067 = vmul.f32 %v1059, %v735
    %v1068 = vmul.f32 %v1064, %v739
    %v1069 = vmul.f32 %v1064, %v741
    %v1070 = vadd.f32 %v1052, %v1066
    %v1071 = vadd.f32 %v1053, %v1067
    %v1072 = vadd.f32 %v1054, %v1068
    %v1073 = vadd.f32 %v1055, %v1069
    %1075 = vset.pattern.permute.xlu0 0
    %1076 = vperm.xlu0 %1075, %v990
    %v1077 = vpop.permute.xlu0 %1076
    %1080 = vset.pattern.permute.xlu0 0
    %1081 = vperm.xlu0 %1080, %v991
    %v1082 = vpop.permute.xlu0 %1081
    %v1084 = vadd.f32 %v1070, %v1077
    %v1085 = vadd.f32 %v1071, %v1077
    %v1086 = vadd.f32 %v1072, %v1082
    %v1087 = vadd.f32 %v1073, %v1082
    %v1088 = vmax.f32 %v1084, 0.0
    %v1089 = vmax.f32 %v1085, 0.0
    %v1090 = vmax.f32 %v1086, 0.0
    %v1091 = vmax.f32 %v1087, 0.0
    %1092 = vst [vmem:[#allocation2] sm:$0xff] %v1038
    %1093 = vst [vmem:[#allocation2 + $0x8] sm:$0xff] %v1040
    %1094 = vst [vmem:[#allocation4] sm:$0xff] %v1088
    %1095 = vst [vmem:[#allocation4 + $0x8] sm:$0xff] %v1090
    %s1096 = scalar_lea.vmem [#allocation2], 16
    %1097 = vst [vmem:[%s1096] sm:$0xff] %v1039
    %1098 = vst [vmem:[%s1096 + $0x8] sm:$0xff] %v1041
    %s1099 = scalar_lea.vmem [#allocation4], 16
    %1100 = vst [vmem:[%s1099] sm:$0xff] %v1089
    %1101 = vst [vmem:[%s1099 + $0x8] sm:$0xff] %v1091
    // Predicated region
    $region26: #{tpu_custom_call.1} parent=1 // pred_check
      _
    $region27: #{tpu_custom_call.1} parent=1 // pred_check_branch
      %1103 = sbr.rel (0) target = $region29
    $region28: #{tpu_custom_call.1} parent=1 // pred_region
      %s1105 = ssub.s32 512, 512
      %1106 = vsyncadd [#allocation3], %s1105
      %s1107 = sshll.u32 [#allocation2], 4
      %s1108 = int_to_ptr.vmem [resolvable:$true] %s1107
      %1113 = dma.vmem_to_hbm [thread:$0]  %s1108, 512, %s6, [#allocation3], 128, 128, 8
    $region29: #{tpu_custom_call.1} parent=1 // pred_fallthru
      _
    // Predicated region
    $region30: #{tpu_custom_call.1} parent=1 // pred_check
      _
    $region31: #{tpu_custom_call.1} parent=1 // pred_check_branch
      %1115 = sbr.rel (0) target = $region33
    $region32: #{tpu_custom_call.1} parent=1 // pred_region
      %s1117 = ssub.s32 512, 512
      %1118 = vsyncadd [#allocation5], %s1117
      %s1119 = sshll.u32 [#allocation4], 4
      %s1120 = int_to_ptr.vmem [resolvable:$true] %s1119
      %1125 = dma.vmem_to_hbm [thread:$0]  %s1120, 512, %s7, [#allocation5], 128, 128, 8
    $region33: #{tpu_custom_call.1} parent=1 // pred_fallthru
      _
    // Predicated region
    $region34: #{tpu_custom_call.1} parent=1 // pred_check
      _
    $region35: #{tpu_custom_call.1} parent=1 // pred_check_branch
      %1127 = sbr.rel (0) target = $region37
    $region36: #{tpu_custom_call.1} parent=1 // pred_region
      %1128 = dma.done [#allocation3], 512
    $region37: #{tpu_custom_call.1} parent=1 // pred_fallthru
      _
    // Predicated region
    $region38: #{tpu_custom_call.1} parent=1 // pred_check
      _
    $region39: #{tpu_custom_call.1} parent=1 // pred_check_branch
      %1130 = sbr.rel (0) target = $region41
    $region40: #{tpu_custom_call.1} parent=1 // pred_region
      %1131 = dma.done [#allocation5], 512
    $region41: #{tpu_custom_call.1} parent=1 // pred_fallthru
      _
    %1132 = vsyncpa [#allocation3], 1
    %1133 = vsyncpa [#allocation5], 1

</llo_original>
